<compile_context>
chip_gen: v5e
topology: v5e:2x2
jax: 0.10.0
libtpu: 0.0.40
codegen_flags: <defaults>
</compile_context>

<pallas_src>
import functools

import jax
import jax.numpy as jnp
from jax.experimental import pallas as pl
from jax.experimental.pallas import tpu as pltpu


# ------------------------------ in-kernel helpers -----------------------------

def _layer_norm(x, w, b, eps=1e-5):
    mu = jnp.mean(x, axis=-1, keepdims=True)
    xc = x - mu
    var = jnp.mean(xc * xc, axis=-1, keepdims=True)
    return xc * jax.lax.rsqrt(var + eps) * w + b


def _softmax_approx(x):
    m = jnp.max(x, axis=-1, keepdims=True)
    e = jnp.exp(x - m)
    return e * pl.reciprocal(jnp.sum(e, axis=-1, keepdims=True), approx=True)


# --------------------------------- fused kernel --------------------------------

def fused_kernel(text_ref, img_ref, aud_ref,
                 i_w_in, i_w_mid, a_w_in, a_w_mid, moe_vecs_ref,
                 w_qkv_ref, w_head2_ref, h_vecs_ref, consts_ref,
                 out_ref, *, num_experts, num_heads):
    H = w_qkv_ref.shape[0]
    E = num_experts
    EH = E * H
    B = text_ref.shape[0]
    hd = H // num_heads
    scale = 1.0 / float(hd) ** 0.5
    bf16, f32 = jnp.bfloat16, jnp.float32

    # host-precomputed 0/1 selection matrices (perf review: no in-kernel iota)
    gate_expand = consts_ref[0:H, :]                    # (H, EH), rows >= E zero
    seg = consts_ref[H:2 * H, :]                        # (H, EH), cols >= heads zero
    head_expand = consts_ref[2 * H:2 * H + EH, 0:H]     # (EH, H), rows >= heads zero

    # --------------------------- EnhancedMoE branch ---------------------------
    def moe(x, w_in_ref, w_mid_ref, vecs):
        # stage 1: ALL experts' first Linear + gating first Linear in ONE matmul
        z = jnp.dot(x.astype(bf16), w_in_ref[...],
                    preferred_element_type=f32) + vecs[0]            # (B, EH+H)
        z = jnp.maximum(z, 0.0)                                       # shared ReLU
        h, gh = z[:, 0:EH], z[:, EH:EH + H]
        # gating second Linear; columns >= E carry a -1e30 bias => gate exactly 0
        logits = jnp.dot(gh.astype(bf16), w_mid_ref[EH:EH + H, :],
                         preferred_element_type=f32) + vecs[1, 0:H]   # (B, H)
        gates = _softmax_approx(logits)                               # (B, H)
        grep = jnp.dot(gates, gate_expand, preferred_element_type=f32)  # (B, EH)
        # sum_e gate_e * (h_e @ w2_e + b2_e) == (h*grep)@w2s + gates@b2
        y = (jnp.dot((h * grep).astype(bf16), w_mid_ref[0:EH, :],
                     preferred_element_type=f32)
             + jnp.dot(gates.astype(bf16), w_mid_ref[EH + H:EH + 2 * H, :],
                       preferred_element_type=f32))                   # (B, H)
        return _layer_norm(y, vecs[2, 0:H], vecs[3, 0:H])

    moe_vecs = moe_vecs_ref[...]
    img_feat = moe(img_ref[...], i_w_in, i_w_mid, moe_vecs[0:8])
    aud_feat = moe(aud_ref[...], a_w_in, a_w_mid, moe_vecs[8:16])
    text_feat = jnp.maximum(text_ref[...], 0.0)        # ReLU (dropout = identity)

    # --------------- multi-head cross-attention over 3 tokens -----------------
    h_vecs = h_vecs_ref[...]
    tok = jnp.concatenate([text_feat, img_feat, aud_feat], axis=0)    # (3B, H)
    qkv = jnp.dot(tok.astype(bf16), w_qkv_ref[...],
                  preferred_element_type=f32) + h_vecs[0]             # (3B, 3H)
    q, k, v = qkv[:, 0:H], qkv[:, H:2 * H], qkv[:, 2 * H:3 * H]

    s, vt = [], []
    for kt in range(3):                                  # 3 key tokens
        k_kt = k[kt * B:(kt + 1) * B, :]
        v_kt = v[kt * B:(kt + 1) * B, :]
        k_rep = jnp.concatenate([k_kt, k_kt, k_kt], axis=0)           # (3B, H)
        vt.append(jnp.concatenate([v_kt, v_kt, v_kt], axis=0))
        # per-head scores for ALL query tokens at once
        s.append(jnp.dot(q * k_rep, seg, preferred_element_type=f32) * scale)
    m = jnp.maximum(jnp.maximum(s[0], s[1]), s[2])
    e = [jnp.exp(si - m) for si in s]
    inv = pl.reciprocal(e[0] + e[1] + e[2], approx=True)
    ctx = sum(jnp.dot(e[kt] * inv, head_expand, preferred_element_type=f32) * vt[kt]
              for kt in range(3))                                     # (3B, H)
    attn = jnp.dot(ctx.astype(bf16), w_head2_ref[0:H, :],
                   preferred_element_type=f32) + h_vecs[1, 0:H]       # (3B, H)

    # ------------------- fusion Linear(3H -> H) + ReLU + LN --------------------
    attn_bf = attn.astype(bf16)
    f = (jnp.dot(attn_bf[0:B], w_head2_ref[H:2 * H, :], preferred_element_type=f32)
         + jnp.dot(attn_bf[B:2 * B], w_head2_ref[2 * H:3 * H, :],
                   preferred_element_type=f32)
         + jnp.dot(attn_bf[2 * B:3 * B], w_head2_ref[3 * H:4 * H, :],
                   preferred_element_type=f32)
         + h_vecs[2, 0:H])
    f = jnp.maximum(f, 0.0)
    f = _layer_norm(f, h_vecs[3, 0:H], h_vecs[4, 0:H])

    # -------------------------- output layer + softmax ------------------------
    logits = jnp.dot(f.astype(bf16), w_head2_ref[4 * H:5 * H, :],
                     preferred_element_type=f32) + h_vecs[5, 0:H]     # (B, out=H)
    mm = jnp.max(logits, axis=-1, keepdims=True)
    ee = jnp.exp(logits - mm)
    out_ref[...] = ee / jnp.sum(ee, axis=-1, keepdims=True)   # exact final softmax


# ----------------------------------- wrapper -----------------------------------

_VMEM = pl.BlockSpec(memory_space=pltpu.MemorySpace.VMEM)


def ultra_smarter_forward(text_feat, image_input, audio_input, params,
                          *, num_experts, num_heads):
    B, H = text_feat.shape
    args = (text_feat, image_input, audio_input,
            params['i_w_in'], params['i_w_mid'],
            params['a_w_in'], params['a_w_mid'], params['moe_vecs'],
            params['w_qkv'], params['w_head2'], params['h_vecs'], params['consts'])
    return pl.pallas_call(
        functools.partial(fused_kernel,
                          num_experts=num_experts, num_heads=num_heads),
        out_shape=jax.ShapeDtypeStruct((B, H), jnp.float32),
        in_specs=[_VMEM] * len(args),
        out_specs=_VMEM,
    )(*args)


# ----------------------- deterministic packed parameters -----------------------

def _rand(key, shape, scale=0.05):
    return jax.random.normal(key, shape, jnp.float32) * scale


def pack_moe_params(key, din, H, E, scale=0.05):
    """EnhancedMoE params packed into two bf16 weight slabs + one f32 vector slab."""
    EH = E * H
    ks = jax.random.split(key, 8)
    wg1 = _rand(ks[0], (din, H), scale)          # gating Linear 1
    bg1 = _rand(ks[1], (H,), scale)
    wg2 = _rand(ks[2], (H, E), scale)            # gating Linear 2
    bg2 = _rand(ks[3], (E,), scale)
    w1s = _rand(ks[4], (din, EH), scale)         # stacked expert first Linears
    b1 = _rand(ks[5], (EH,), scale)
    w2s = _rand(ks[6], (EH, H), scale)           # stacked expert second Linears
    b2 = _rand(ks[7], (E, H), scale)

    # slab A: [w1s | wg1] -> one stage-1 matmul
    w_in = jnp.concatenate([w1s, wg1], axis=1).astype(jnp.bfloat16)       # (din, EH+H)
    # slab B rows: [w2s ; wg2 padded to (H,H) ; b2 padded to (H,H)]
    wg2_pad = jnp.zeros((H, H), jnp.float32).at[:, :E].set(wg2)
    b2_pad = jnp.zeros((H, H), jnp.float32).at[:E, :].set(b2)
    w_mid = jnp.concatenate([w2s, wg2_pad, b2_pad], axis=0).astype(jnp.bfloat16)

    # f32 vector slab rows: b_in, gating bias (-1e30 on fake experts), LN w, LN b
    vecs = jnp.zeros((8, EH + H), jnp.float32)
    vecs = vecs.at[0, :].set(jnp.concatenate([b1, bg1]))
    vecs = vecs.at[1, :H].set(jnp.full((H,), -1e30, jnp.float32).at[:E].set(bg2))
    vecs = vecs.at[2, :H].set(jnp.ones((H,), jnp.float32))
    vecs = vecs.at[3, :H].set(jnp.zeros((H,), jnp.float32))
    return w_in, w_mid, vecs


def pack_head_params(key, H, scale=0.05):
    """Attention / fusion / output params: fused QKV + one (5H,H) slab + f32 vecs."""
    ks = jax.random.split(key, 12)
    wq, bq = _rand(ks[0], (H, H), scale), _rand(ks[1], (H,), scale)
    wk, bk = _rand(ks[2], (H, H), scale), _rand(ks[3], (H,), scale)
    wv, bv = _rand(ks[4], (H, H), scale), _rand(ks[5], (H,), scale)
    w_out, b_out = _rand(ks[6], (H, H), scale), _rand(ks[7], (H,), scale)
    wf = _rand(ks[8], (3 * H, H), scale)          # fusion Linear(3H, H)
    b_fuse = _rand(ks[9], (H,), scale)
    w_o = _rand(ks[10], (H, H), scale)            # output_dim == hidden (num_classes=None)
    b_o = _rand(ks[11], (H,), scale)

    w_qkv = jnp.concatenate([wq, wk, wv], axis=1).astype(jnp.bfloat16)    # (H, 3H)
    w_head2 = jnp.concatenate([w_out, wf[0:H], wf[H:2 * H], wf[2 * H:3 * H], w_o],
                              axis=0).astype(jnp.bfloat16)                # (5H, H)
    h_vecs = jnp.zeros((6, 3 * H), jnp.float32)
    h_vecs = h_vecs.at[0, :].set(jnp.concatenate([bq, bk, bv]))
    h_vecs = h_vecs.at[1, :H].set(b_out)
    h_vecs = h_vecs.at[2, :H].set(b_fuse)
    h_vecs = h_vecs.at[3, :H].set(jnp.ones((H,), jnp.float32))    # LayerNorm w
    h_vecs = h_vecs.at[4, :H].set(jnp.zeros((H,), jnp.float32))   # LayerNorm b
    h_vecs = h_vecs.at[5, :H].set(b_o)
    return w_qkv, w_head2, h_vecs


def make_consts(H, E, heads):
    """Host-built 0/1 selection matrices packed into one (2H+EH, EH) f32 slab."""
    EH = E * H
    hd = H // heads
    gate_expand = (jnp.arange(H)[:, None]
                   == (jnp.arange(EH)[None, :] // H)).astype(jnp.float32)       # (H, EH)
    seg = ((jnp.arange(H)[:, None] // hd)
           == jnp.arange(EH)[None, :]).astype(jnp.float32)                      # (H, EH)
    head_expand = jnp.zeros((EH, EH), jnp.float32).at[:, :H].set(
        (jnp.arange(EH)[:, None]
         == (jnp.arange(H)[None, :] // hd)).astype(jnp.float32))                # (EH, EH)
    return jnp.concatenate([gate_expand, seg, head_expand], axis=0)


# -------------------------------------- main -----------------------------------

if __name__ == "__main__":
    B = 2
    hidden_dim = 32      # expert_dim == fusion hidden == output_dim (num_classes=None)
    image_dim = 48
    audio_dim = 16
    num_experts = 4      # EnhancedMoE default is 12; scaled down for the demo
    num_heads = 8

    key = jax.random.PRNGKey(0)
    k_img, k_aud, k_head, k_t, k_i, k_a = jax.random.split(key, 6)

    i_w_in, i_w_mid, i_vecs = pack_moe_params(k_img, image_dim, hidden_dim, num_experts)
    a_w_in, a_w_mid, a_vecs = pack_moe_params(k_aud, audio_dim, hidden_dim, num_experts)
    w_qkv, w_head2, h_vecs = pack_head_params(k_head, hidden_dim)

    params = dict(
        i_w_in=i_w_in, i_w_mid=i_w_mid,
        a_w_in=a_w_in, a_w_mid=a_w_mid,
        moe_vecs=jnp.concatenate([i_vecs, a_vecs], axis=0),
        w_qkv=w_qkv, w_head2=w_head2, h_vecs=h_vecs,
        consts=make_consts(hidden_dim, num_experts, num_heads),
    )

    # Inputs: precomputed BERT CLS text features + raw image / audio feature vectors.
    text_feat = jax.random.normal(k_t, (B, hidden_dim), jnp.float32)
    image_input = jax.random.normal(k_i, (B, image_dim), jnp.float32)
    audio_input = jax.random.normal(k_a, (B, audio_dim), jnp.float32)

    out = ultra_smarter_forward(text_feat, image_input, audio_input, params,
                                num_experts=num_experts, num_heads=num_heads)
    out = jax.block_until_ready(out)
    assert out.shape == (B, hidden_dim)
    print("KERNEL_OK")
</pallas_src>

<mosaic_0001>
module attributes {stable_mosaic.version = 11 : i64} {
  func.func @fused_kernel(%arg0: memref<2x32xf32, #tpu.memory_space<vmem>>, %arg1: memref<2x48xf32, #tpu.memory_space<vmem>>, %arg2: memref<2x16xf32, #tpu.memory_space<vmem>>, %arg3: memref<48x160xbf16, #tpu.memory_space<vmem>>, %arg4: memref<192x32xbf16, #tpu.memory_space<vmem>>, %arg5: memref<16x160xbf16, #tpu.memory_space<vmem>>, %arg6: memref<192x32xbf16, #tpu.memory_space<vmem>>, %arg7: memref<16x160xf32, #tpu.memory_space<vmem>>, %arg8: memref<32x96xbf16, #tpu.memory_space<vmem>>, %arg9: memref<160x32xbf16, #tpu.memory_space<vmem>>, %arg10: memref<6x96xf32, #tpu.memory_space<vmem>>, %arg11: memref<192x128xf32, #tpu.memory_space<vmem>>, %arg12: memref<2x32xf32, #tpu.memory_space<vmem>>) attributes {dimension_semantics = [], scalar_prefetch = 0 : i64, scratch_operands = 0 : i64, tpu.core_type = #tpu.core_type<tc>} {
    %c0 = arith.constant 0 : index
    %c0_0 = arith.constant 0 : index
    %0 = vector.load %arg11[%c0, %c0_0] : memref<192x128xf32, #tpu.memory_space<vmem>>, vector<32x128xf32>
    %c32 = arith.constant 32 : index
    %c0_1 = arith.constant 0 : index
    %1 = vector.load %arg11[%c32, %c0_1] : memref<192x128xf32, #tpu.memory_space<vmem>>, vector<32x128xf32>
    %c64 = arith.constant 64 : index
    %c0_2 = arith.constant 0 : index
    %2 = vector.load %arg11[%c64, %c0_2] : memref<192x128xf32, #tpu.memory_space<vmem>>, vector<128x32xf32>
    %c0_3 = arith.constant 0 : index
    %c0_4 = arith.constant 0 : index
    %3 = vector.load %arg7[%c0_3, %c0_4] : memref<16x160xf32, #tpu.memory_space<vmem>>, vector<16x160xf32>
    %c0_5 = arith.constant 0 : index
    %c0_6 = arith.constant 0 : index
    %4 = vector.load %arg1[%c0_5, %c0_6] : memref<2x48xf32, #tpu.memory_space<vmem>>, vector<2x48xf32>
    %5 = vector.extract_strided_slice %3 {offsets = [0, 0], sizes = [8, 160], strides = [1, 1]} : vector<16x160xf32> to vector<8x160xf32>
    %6 = arith.truncf %4 : vector<2x48xf32> to vector<2x48xbf16>
    %c0_7 = arith.constant 0 : index
    %c0_8 = arith.constant 0 : index
    %7 = vector.load %arg3[%c0_7, %c0_8] : memref<48x160xbf16, #tpu.memory_space<vmem>>, vector<48x160xbf16>
    %cst = arith.constant dense<0.000000e+00> : vector<2x160xf32>
    %8 = tpu.matmul %6, %7, %cst {dimension_numbers = #tpu.dot_dimension_numbers<[1], [0], [0], [1], [0, 0, 1, 1], [], []>} : vector<2x48xbf16>, vector<48x160xbf16>, vector<2x160xf32> -> vector<2x160xf32>
    %9 = vector.extract_strided_slice %5 {offsets = [0, 0], sizes = [1, 160], strides = [1, 1]} : vector<8x160xf32> to vector<1x160xf32>
    %10 = vector.shape_cast %9 : vector<1x160xf32> to vector<160xf32>
    %11 = vector.shape_cast %10 : vector<160xf32> to vector<1x160xf32>
    %12 = vector.broadcast %11 : vector<1x160xf32> to vector<2x160xf32>
    %13 = arith.addf %8, %12 : vector<2x160xf32>
    %cst_9 = arith.constant 0.000000e+00 : f32
    %14 = vector.broadcast %cst_9 : f32 to vector<2x160xf32>
    %15 = arith.maximumf %13, %14 : vector<2x160xf32>
    %16 = vector.extract_strided_slice %15 {offsets = [0, 0], sizes = [2, 128], strides = [1, 1]} : vector<2x160xf32> to vector<2x128xf32>
    %17 = vector.extract_strided_slice %15 {offsets = [0, 128], sizes = [2, 32], strides = [1, 1]} : vector<2x160xf32> to vector<2x32xf32>
    %18 = arith.truncf %17 : vector<2x32xf32> to vector<2x32xbf16>
    %c128 = arith.constant 128 : index
    %c0_10 = arith.constant 0 : index
    %19 = vector.load %arg4[%c128, %c0_10] : memref<192x32xbf16, #tpu.memory_space<vmem>>, vector<32x32xbf16>
    %cst_11 = arith.constant dense<0.000000e+00> : vector<2x32xf32>
    %20 = tpu.matmul %18, %19, %cst_11 {dimension_numbers = #tpu.dot_dimension_numbers<[1], [0], [0], [1], [0, 0, 1, 1], [], []>} : vector<2x32xbf16>, vector<32x32xbf16>, vector<2x32xf32> -> vector<2x32xf32>
    %21 = vector.extract_strided_slice %5 {offsets = [1, 0], sizes = [1, 32], strides = [1, 1]} : vector<8x160xf32> to vector<1x32xf32>
    %22 = vector.shape_cast %21 : vector<1x32xf32> to vector<32xf32>
    %23 = vector.shape_cast %22 : vector<32xf32> to vector<1x32xf32>
    %24 = vector.broadcast %23 : vector<1x32xf32> to vector<2x32xf32>
    %25 = arith.addf %20, %24 : vector<2x32xf32>
    %cst_12 = arith.constant dense<0xFF800000> : vector<2xf32>
    %26 = vector.multi_reduction <maximumf>, %25, %cst_12 [1] : vector<2x32xf32> to vector<2xf32>
    %27 = vector.shape_cast %26 : vector<2xf32> to vector<2x1xf32>
    %28 = vector.broadcast %27 : vector<2x1xf32> to vector<2x32xf32>
    %29 = arith.subf %25, %28 : vector<2x32xf32>
    %30 = math.exp %29 : vector<2x32xf32>
    %cst_13 = arith.constant dense<0.000000e+00> : vector<2xf32>
    %31 = vector.multi_reduction <add>, %30, %cst_13 [1] : vector<2x32xf32> to vector<2xf32>
    %32 = vector.shape_cast %31 : vector<2xf32> to vector<2x1xf32>
    %33 = tpu.reciprocal %32 {approx = true} : vector<2x1xf32> -> vector<2x1xf32>
    %34 = vector.broadcast %33 : vector<2x1xf32> to vector<2x32xf32>
    %35 = arith.mulf %30, %34 : vector<2x32xf32>
    %cst_14 = arith.constant dense<0.000000e+00> : vector<2x128xf32>
    %36 = tpu.matmul %35, %0, %cst_14 {dimension_numbers = #tpu.dot_dimension_numbers<[1], [0], [0], [1], [0, 0, 1, 1], [], []>} : vector<2x32xf32>, vector<32x128xf32>, vector<2x128xf32> -> vector<2x128xf32>
    %37 = arith.mulf %16, %36 : vector<2x128xf32>
    %38 = arith.truncf %37 : vector<2x128xf32> to vector<2x128xbf16>
    %c0_15 = arith.constant 0 : index
    %c0_16 = arith.constant 0 : index
    %39 = vector.load %arg4[%c0_15, %c0_16] : memref<192x32xbf16, #tpu.memory_space<vmem>>, vector<128x32xbf16>
    %cst_17 = arith.constant dense<0.000000e+00> : vector<2x32xf32>
    %40 = tpu.matmul %38, %39, %cst_17 {dimension_numbers = #tpu.dot_dimension_numbers<[1], [0], [0], [1], [0, 0, 1, 1], [], []>} : vector<2x128xbf16>, vector<128x32xbf16>, vector<2x32xf32> -> vector<2x32xf32>
    %41 = arith.truncf %35 : vector<2x32xf32> to vector<2x32xbf16>
    %c160 = arith.constant 160 : index
    %c0_18 = arith.constant 0 : index
    %42 = vector.load %arg4[%c160, %c0_18] : memref<192x32xbf16, #tpu.memory_space<vmem>>, vector<32x32xbf16>
    %cst_19 = arith.constant dense<0.000000e+00> : vector<2x32xf32>
    %43 = tpu.matmul %41, %42, %cst_19 {dimension_numbers = #tpu.dot_dimension_numbers<[1], [0], [0], [1], [0, 0, 1, 1], [], []>} : vector<2x32xbf16>, vector<32x32xbf16>, vector<2x32xf32> -> vector<2x32xf32>
    %44 = arith.addf %40, %43 : vector<2x32xf32>
    %45 = vector.extract_strided_slice %5 {offsets = [2, 0], sizes = [1, 32], strides = [1, 1]} : vector<8x160xf32> to vector<1x32xf32>
    %46 = vector.shape_cast %45 : vector<1x32xf32> to vector<32xf32>
    %47 = vector.extract_strided_slice %5 {offsets = [3, 0], sizes = [1, 32], strides = [1, 1]} : vector<8x160xf32> to vector<1x32xf32>
    %48 = vector.shape_cast %47 : vector<1x32xf32> to vector<32xf32>
    %cst_20 = arith.constant dense<0.000000e+00> : vector<2xf32>
    %49 = vector.multi_reduction <add>, %44, %cst_20 [1] : vector<2x32xf32> to vector<2xf32>
    %50 = vector.shape_cast %49 : vector<2xf32> to vector<2x1xf32>
    %cst_21 = arith.constant 3.200000e+01 : f32
    %51 = vector.broadcast %cst_21 : f32 to vector<2x1xf32>
    %52 = arith.divf %50, %51 : vector<2x1xf32>
    %53 = vector.broadcast %52 : vector<2x1xf32> to vector<2x32xf32>
    %54 = arith.subf %44, %53 : vector<2x32xf32>
    %55 = arith.mulf %54, %54 : vector<2x32xf32>
    %cst_22 = arith.constant dense<0.000000e+00> : vector<2xf32>
    %56 = vector.multi_reduction <add>, %55, %cst_22 [1] : vector<2x32xf32> to vector<2xf32>
    %57 = vector.shape_cast %56 : vector<2xf32> to vector<2x1xf32>
    %cst_23 = arith.constant 3.200000e+01 : f32
    %58 = vector.broadcast %cst_23 : f32 to vector<2x1xf32>
    %59 = arith.divf %57, %58 : vector<2x1xf32>
    %cst_24 = arith.constant 9.99999974E-6 : f32
    %60 = vector.broadcast %cst_24 : f32 to vector<2x1xf32>
    %61 = arith.addf %59, %60 : vector<2x1xf32>
    %62 = math.rsqrt %61 : vector<2x1xf32>
    %63 = vector.broadcast %62 : vector<2x1xf32> to vector<2x32xf32>
    %64 = arith.mulf %54, %63 : vector<2x32xf32>
    %65 = vector.shape_cast %46 : vector<32xf32> to vector<1x32xf32>
    %66 = vector.broadcast %65 : vector<1x32xf32> to vector<2x32xf32>
    %67 = arith.mulf %64, %66 : vector<2x32xf32>
    %68 = vector.shape_cast %48 : vector<32xf32> to vector<1x32xf32>
    %69 = vector.broadcast %68 : vector<1x32xf32> to vector<2x32xf32>
    %70 = arith.addf %67, %69 : vector<2x32xf32>
    %c0_25 = arith.constant 0 : index
    %c0_26 = arith.constant 0 : index
    %71 = vector.load %arg2[%c0_25, %c0_26] : memref<2x16xf32, #tpu.memory_space<vmem>>, vector<2x16xf32>
    %72 = vector.extract_strided_slice %3 {offsets = [8, 0], sizes = [8, 160], strides = [1, 1]} : vector<16x160xf32> to vector<8x160xf32>
    %73 = arith.truncf %71 : vector<2x16xf32> to vector<2x16xbf16>
    %c0_27 = arith.constant 0 : index
    %c0_28 = arith.constant 0 : index
    %74 = vector.load %arg5[%c0_27, %c0_28] : memref<16x160xbf16, #tpu.memory_space<vmem>>, vector<16x160xbf16>
    %cst_29 = arith.constant dense<0.000000e+00> : vector<2x160xf32>
    %75 = tpu.matmul %73, %74, %cst_29 {dimension_numbers = #tpu.dot_dimension_numbers<[1], [0], [0], [1], [0, 0, 1, 1], [], []>} : vector<2x16xbf16>, vector<16x160xbf16>, vector<2x160xf32> -> vector<2x160xf32>
    %76 = vector.extract_strided_slice %72 {offsets = [0, 0], sizes = [1, 160], strides = [1, 1]} : vector<8x160xf32> to vector<1x160xf32>
    %77 = vector.shape_cast %76 : vector<1x160xf32> to vector<160xf32>
    %78 = vector.shape_cast %77 : vector<160xf32> to vector<1x160xf32>
    %79 = vector.broadcast %78 : vector<1x160xf32> to vector<2x160xf32>
    %80 = arith.addf %75, %79 : vector<2x160xf32>
    %cst_30 = arith.constant 0.000000e+00 : f32
    %81 = vector.broadcast %cst_30 : f32 to vector<2x160xf32>
    %82 = arith.maximumf %80, %81 : vector<2x160xf32>
    %83 = vector.extract_strided_slice %82 {offsets = [0, 0], sizes = [2, 128], strides = [1, 1]} : vector<2x160xf32> to vector<2x128xf32>
    %84 = vector.extract_strided_slice %82 {offsets = [0, 128], sizes = [2, 32], strides = [1, 1]} : vector<2x160xf32> to vector<2x32xf32>
    %85 = arith.truncf %84 : vector<2x32xf32> to vector<2x32xbf16>
    %c128_31 = arith.constant 128 : index
    %c0_32 = arith.constant 0 : index
    %86 = vector.load %arg6[%c128_31, %c0_32] : memref<192x32xbf16, #tpu.memory_space<vmem>>, vector<32x32xbf16>
    %cst_33 = arith.constant dense<0.000000e+00> : vector<2x32xf32>
    %87 = tpu.matmul %85, %86, %cst_33 {dimension_numbers = #tpu.dot_dimension_numbers<[1], [0], [0], [1], [0, 0, 1, 1], [], []>} : vector<2x32xbf16>, vector<32x32xbf16>, vector<2x32xf32> -> vector<2x32xf32>
    %88 = vector.extract_strided_slice %72 {offsets = [1, 0], sizes = [1, 32], strides = [1, 1]} : vector<8x160xf32> to vector<1x32xf32>
    %89 = vector.shape_cast %88 : vector<1x32xf32> to vector<32xf32>
    %90 = vector.shape_cast %89 : vector<32xf32> to vector<1x32xf32>
    %91 = vector.broadcast %90 : vector<1x32xf32> to vector<2x32xf32>
    %92 = arith.addf %87, %91 : vector<2x32xf32>
    %cst_34 = arith.constant dense<0xFF800000> : vector<2xf32>
    %93 = vector.multi_reduction <maximumf>, %92, %cst_34 [1] : vector<2x32xf32> to vector<2xf32>
    %94 = vector.shape_cast %93 : vector<2xf32> to vector<2x1xf32>
    %95 = vector.broadcast %94 : vector<2x1xf32> to vector<2x32xf32>
    %96 = arith.subf %92, %95 : vector<2x32xf32>
    %97 = math.exp %96 : vector<2x32xf32>
    %cst_35 = arith.constant dense<0.000000e+00> : vector<2xf32>
    %98 = vector.multi_reduction <add>, %97, %cst_35 [1] : vector<2x32xf32> to vector<2xf32>
    %99 = vector.shape_cast %98 : vector<2xf32> to vector<2x1xf32>
    %100 = tpu.reciprocal %99 {approx = true} : vector<2x1xf32> -> vector<2x1xf32>
    %101 = vector.broadcast %100 : vector<2x1xf32> to vector<2x32xf32>
    %102 = arith.mulf %97, %101 : vector<2x32xf32>
    %cst_36 = arith.constant dense<0.000000e+00> : vector<2x128xf32>
    %103 = tpu.matmul %102, %0, %cst_36 {dimension_numbers = #tpu.dot_dimension_numbers<[1], [0], [0], [1], [0, 0, 1, 1], [], []>} : vector<2x32xf32>, vector<32x128xf32>, vector<2x128xf32> -> vector<2x128xf32>
    %104 = arith.mulf %83, %103 : vector<2x128xf32>
    %105 = arith.truncf %104 : vector<2x128xf32> to vector<2x128xbf16>
    %c0_37 = arith.constant 0 : index
    %c0_38 = arith.constant 0 : index
    %106 = vector.load %arg6[%c0_37, %c0_38] : memref<192x32xbf16, #tpu.memory_space<vmem>>, vector<128x32xbf16>
    %cst_39 = arith.constant dense<0.000000e+00> : vector<2x32xf32>
    %107 = tpu.matmul %105, %106, %cst_39 {dimension_numbers = #tpu.dot_dimension_numbers<[1], [0], [0], [1], [0, 0, 1, 1], [], []>} : vector<2x128xbf16>, vector<128x32xbf16>, vector<2x32xf32> -> vector<2x32xf32>
    %108 = arith.truncf %102 : vector<2x32xf32> to vector<2x32xbf16>
    %c160_40 = arith.constant 160 : index
    %c0_41 = arith.constant 0 : index
    %109 = vector.load %arg6[%c160_40, %c0_41] : memref<192x32xbf16, #tpu.memory_space<vmem>>, vector<32x32xbf16>
    %cst_42 = arith.constant dense<0.000000e+00> : vector<2x32xf32>
    %110 = tpu.matmul %108, %109, %cst_42 {dimension_numbers = #tpu.dot_dimension_numbers<[1], [0], [0], [1], [0, 0, 1, 1], [], []>} : vector<2x32xbf16>, vector<32x32xbf16>, vector<2x32xf32> -> vector<2x32xf32>
    %111 = arith.addf %107, %110 : vector<2x32xf32>
    %112 = vector.extract_strided_slice %72 {offsets = [2, 0], sizes = [1, 32], strides = [1, 1]} : vector<8x160xf32> to vector<1x32xf32>
    %113 = vector.shape_cast %112 : vector<1x32xf32> to vector<32xf32>
    %114 = vector.extract_strided_slice %72 {offsets = [3, 0], sizes = [1, 32], strides = [1, 1]} : vector<8x160xf32> to vector<1x32xf32>
    %115 = vector.shape_cast %114 : vector<1x32xf32> to vector<32xf32>
    %cst_43 = arith.constant dense<0.000000e+00> : vector<2xf32>
    %116 = vector.multi_reduction <add>, %111, %cst_43 [1] : vector<2x32xf32> to vector<2xf32>
    %117 = vector.shape_cast %116 : vector<2xf32> to vector<2x1xf32>
    %cst_44 = arith.constant 3.200000e+01 : f32
    %118 = vector.broadcast %cst_44 : f32 to vector<2x1xf32>
    %119 = arith.divf %117, %118 : vector<2x1xf32>
    %120 = vector.broadcast %119 : vector<2x1xf32> to vector<2x32xf32>
    %121 = arith.subf %111, %120 : vector<2x32xf32>
    %122 = arith.mulf %121, %121 : vector<2x32xf32>
    %cst_45 = arith.constant dense<0.000000e+00> : vector<2xf32>
    %123 = vector.multi_reduction <add>, %122, %cst_45 [1] : vector<2x32xf32> to vector<2xf32>
    %124 = vector.shape_cast %123 : vector<2xf32> to vector<2x1xf32>
    %cst_46 = arith.constant 3.200000e+01 : f32
    %125 = vector.broadcast %cst_46 : f32 to vector<2x1xf32>
    %126 = arith.divf %124, %125 : vector<2x1xf32>
    %cst_47 = arith.constant 9.99999974E-6 : f32
    %127 = vector.broadcast %cst_47 : f32 to vector<2x1xf32>
    %128 = arith.addf %126, %127 : vector<2x1xf32>
    %129 = math.rsqrt %128 : vector<2x1xf32>
    %130 = vector.broadcast %129 : vector<2x1xf32> to vector<2x32xf32>
    %131 = arith.mulf %121, %130 : vector<2x32xf32>
    %132 = vector.shape_cast %113 : vector<32xf32> to vector<1x32xf32>
    %133 = vector.broadcast %132 : vector<1x32xf32> to vector<2x32xf32>
    %134 = arith.mulf %131, %133 : vector<2x32xf32>
    %135 = vector.shape_cast %115 : vector<32xf32> to vector<1x32xf32>
    %136 = vector.broadcast %135 : vector<1x32xf32> to vector<2x32xf32>
    %137 = arith.addf %134, %136 : vector<2x32xf32>
    %c0_48 = arith.constant 0 : index
    %c0_49 = arith.constant 0 : index
    %138 = vector.load %arg0[%c0_48, %c0_49] : memref<2x32xf32, #tpu.memory_space<vmem>>, vector<2x32xf32>
    %cst_50 = arith.constant 0.000000e+00 : f32
    %139 = vector.broadcast %cst_50 : f32 to vector<2x32xf32>
    %140 = arith.maximumf %138, %139 : vector<2x32xf32>
    %c0_51 = arith.constant 0 : index
    %c0_52 = arith.constant 0 : index
    %141 = vector.load %arg10[%c0_51, %c0_52] : memref<6x96xf32, #tpu.memory_space<vmem>>, vector<6x96xf32>
    %142 = tpu.concatenate %140, %70, %137 in 0 : vector<2x32xf32>, vector<2x32xf32>, vector<2x32xf32> -> vector<6x32xf32>
    %143 = arith.truncf %142 : vector<6x32xf32> to vector<6x32xbf16>
    %c0_53 = arith.constant 0 : index
    %c0_54 = arith.constant 0 : index
    %144 = vector.load %arg8[%c0_53, %c0_54] : memref<32x96xbf16, #tpu.memory_space<vmem>>, vector<32x96xbf16>
    %cst_55 = arith.constant dense<0.000000e+00> : vector<6x96xf32>
    %145 = tpu.matmul %143, %144, %cst_55 {dimension_numbers = #tpu.dot_dimension_numbers<[1], [0], [0], [1], [0, 0, 1, 1], [], []>} : vector<6x32xbf16>, vector<32x96xbf16>, vector<6x96xf32> -> vector<6x96xf32>
    %146 = vector.extract_strided_slice %141 {offsets = [0, 0], sizes = [1, 96], strides = [1, 1]} : vector<6x96xf32> to vector<1x96xf32>
    %147 = vector.shape_cast %146 : vector<1x96xf32> to vector<96xf32>
    %148 = vector.shape_cast %147 : vector<96xf32> to vector<1x96xf32>
    %149 = vector.broadcast %148 : vector<1x96xf32> to vector<6x96xf32>
    %150 = arith.addf %145, %149 : vector<6x96xf32>
    %151 = vector.extract_strided_slice %150 {offsets = [0, 0], sizes = [6, 32], strides = [1, 1]} : vector<6x96xf32> to vector<6x32xf32>
    %152 = vector.extract_strided_slice %150 {offsets = [0, 32], sizes = [6, 32], strides = [1, 1]} : vector<6x96xf32> to vector<6x32xf32>
    %153 = vector.extract_strided_slice %150 {offsets = [0, 64], sizes = [6, 32], strides = [1, 1]} : vector<6x96xf32> to vector<6x32xf32>
    %154 = vector.extract_strided_slice %152 {offsets = [0, 0], sizes = [2, 32], strides = [1, 1]} : vector<6x32xf32> to vector<2x32xf32>
    %155 = vector.extract_strided_slice %153 {offsets = [0, 0], sizes = [2, 32], strides = [1, 1]} : vector<6x32xf32> to vector<2x32xf32>
    %156 = tpu.concatenate %154, %154, %154 in 0 : vector<2x32xf32>, vector<2x32xf32>, vector<2x32xf32> -> vector<6x32xf32>
    %157 = tpu.concatenate %155, %155, %155 in 0 : vector<2x32xf32>, vector<2x32xf32>, vector<2x32xf32> -> vector<6x32xf32>
    %158 = arith.mulf %151, %156 : vector<6x32xf32>
    %cst_56 = arith.constant dense<0.000000e+00> : vector<6x128xf32>
    %159 = tpu.matmul %158, %1, %cst_56 {dimension_numbers = #tpu.dot_dimension_numbers<[1], [0], [0], [1], [0, 0, 1, 1], [], []>} : vector<6x32xf32>, vector<32x128xf32>, vector<6x128xf32> -> vector<6x128xf32>
    %cst_57 = arith.constant 5.000000e-01 : f32
    %160 = vector.broadcast %cst_57 : f32 to vector<6x128xf32>
    %161 = arith.mulf %159, %160 : vector<6x128xf32>
    %162 = vector.extract_strided_slice %152 {offsets = [2, 0], sizes = [2, 32], strides = [1, 1]} : vector<6x32xf32> to vector<2x32xf32>
    %163 = vector.extract_strided_slice %153 {offsets = [2, 0], sizes = [2, 32], strides = [1, 1]} : vector<6x32xf32> to vector<2x32xf32>
    %164 = tpu.concatenate %162, %162, %162 in 0 : vector<2x32xf32>, vector<2x32xf32>, vector<2x32xf32> -> vector<6x32xf32>
    %165 = tpu.concatenate %163, %163, %163 in 0 : vector<2x32xf32>, vector<2x32xf32>, vector<2x32xf32> -> vector<6x32xf32>
    %166 = arith.mulf %151, %164 : vector<6x32xf32>
    %cst_58 = arith.constant dense<0.000000e+00> : vector<6x128xf32>
    %167 = tpu.matmul %166, %1, %cst_58 {dimension_numbers = #tpu.dot_dimension_numbers<[1], [0], [0], [1], [0, 0, 1, 1], [], []>} : vector<6x32xf32>, vector<32x128xf32>, vector<6x128xf32> -> vector<6x128xf32>
    %cst_59 = arith.constant 5.000000e-01 : f32
    %168 = vector.broadcast %cst_59 : f32 to vector<6x128xf32>
    %169 = arith.mulf %167, %168 : vector<6x128xf32>
    %170 = vector.extract_strided_slice %152 {offsets = [4, 0], sizes = [2, 32], strides = [1, 1]} : vector<6x32xf32> to vector<2x32xf32>
    %171 = vector.extract_strided_slice %153 {offsets = [4, 0], sizes = [2, 32], strides = [1, 1]} : vector<6x32xf32> to vector<2x32xf32>
    %172 = tpu.concatenate %170, %170, %170 in 0 : vector<2x32xf32>, vector<2x32xf32>, vector<2x32xf32> -> vector<6x32xf32>
    %173 = tpu.concatenate %171, %171, %171 in 0 : vector<2x32xf32>, vector<2x32xf32>, vector<2x32xf32> -> vector<6x32xf32>
    %174 = arith.mulf %151, %172 : vector<6x32xf32>
    %cst_60 = arith.constant dense<0.000000e+00> : vector<6x128xf32>
    %175 = tpu.matmul %174, %1, %cst_60 {dimension_numbers = #tpu.dot_dimension_numbers<[1], [0], [0], [1], [0, 0, 1, 1], [], []>} : vector<6x32xf32>, vector<32x128xf32>, vector<6x128xf32> -> vector<6x128xf32>
    %cst_61 = arith.constant 5.000000e-01 : f32
    %176 = vector.broadcast %cst_61 : f32 to vector<6x128xf32>
    %177 = arith.mulf %175, %176 : vector<6x128xf32>
    %178 = arith.maximumf %161, %169 : vector<6x128xf32>
    %179 = arith.maximumf %178, %177 : vector<6x128xf32>
    %180 = arith.subf %161, %179 : vector<6x128xf32>
    %181 = math.exp %180 : vector<6x128xf32>
    %182 = arith.subf %169, %179 : vector<6x128xf32>
    %183 = math.exp %182 : vector<6x128xf32>
    %184 = arith.subf %177, %179 : vector<6x128xf32>
    %185 = math.exp %184 : vector<6x128xf32>
    %186 = arith.addf %181, %183 : vector<6x128xf32>
    %187 = arith.addf %186, %185 : vector<6x128xf32>
    %188 = tpu.reciprocal %187 {approx = true} : vector<6x128xf32> -> vector<6x128xf32>
    %189 = arith.mulf %181, %188 : vector<6x128xf32>
    %cst_62 = arith.constant dense<0.000000e+00> : vector<6x32xf32>
    %190 = tpu.matmul %189, %2, %cst_62 {dimension_numbers = #tpu.dot_dimension_numbers<[1], [0], [0], [1], [0, 0, 1, 1], [], []>} : vector<6x128xf32>, vector<128x32xf32>, vector<6x32xf32> -> vector<6x32xf32>
    %191 = arith.mulf %190, %157 : vector<6x32xf32>
    %cst_63 = arith.constant 0.000000e+00 : f32
    %192 = vector.broadcast %cst_63 : f32 to vector<6x32xf32>
    %193 = arith.addf %192, %191 : vector<6x32xf32>
    %194 = arith.mulf %183, %188 : vector<6x128xf32>
    %cst_64 = arith.constant dense<0.000000e+00> : vector<6x32xf32>
    %195 = tpu.matmul %194, %2, %cst_64 {dimension_numbers = #tpu.dot_dimension_numbers<[1], [0], [0], [1], [0, 0, 1, 1], [], []>} : vector<6x128xf32>, vector<128x32xf32>, vector<6x32xf32> -> vector<6x32xf32>
    %196 = arith.mulf %195, %165 : vector<6x32xf32>
    %197 = arith.addf %193, %196 : vector<6x32xf32>
    %198 = arith.mulf %185, %188 : vector<6x128xf32>
    %cst_65 = arith.constant dense<0.000000e+00> : vector<6x32xf32>
    %199 = tpu.matmul %198, %2, %cst_65 {dimension_numbers = #tpu.dot_dimension_numbers<[1], [0], [0], [1], [0, 0, 1, 1], [], []>} : vector<6x128xf32>, vector<128x32xf32>, vector<6x32xf32> -> vector<6x32xf32>
    %200 = arith.mulf %199, %173 : vector<6x32xf32>
    %201 = arith.addf %197, %200 : vector<6x32xf32>
    %202 = arith.truncf %201 : vector<6x32xf32> to vector<6x32xbf16>
    %c0_66 = arith.constant 0 : index
    %c0_67 = arith.constant 0 : index
    %203 = vector.load %arg9[%c0_66, %c0_67] : memref<160x32xbf16, #tpu.memory_space<vmem>>, vector<32x32xbf16>
    %cst_68 = arith.constant dense<0.000000e+00> : vector<6x32xf32>
    %204 = tpu.matmul %202, %203, %cst_68 {dimension_numbers = #tpu.dot_dimension_numbers<[1], [0], [0], [1], [0, 0, 1, 1], [], []>} : vector<6x32xbf16>, vector<32x32xbf16>, vector<6x32xf32> -> vector<6x32xf32>
    %205 = vector.extract_strided_slice %141 {offsets = [1, 0], sizes = [1, 32], strides = [1, 1]} : vector<6x96xf32> to vector<1x32xf32>
    %206 = vector.shape_cast %205 : vector<1x32xf32> to vector<32xf32>
    %207 = vector.shape_cast %206 : vector<32xf32> to vector<1x32xf32>
    %208 = vector.broadcast %207 : vector<1x32xf32> to vector<6x32xf32>
    %209 = arith.addf %204, %208 : vector<6x32xf32>
    %210 = arith.truncf %209 : vector<6x32xf32> to vector<6x32xbf16>
    %211 = vector.extract_strided_slice %210 {offsets = [0, 0], sizes = [2, 32], strides = [1, 1]} : vector<6x32xbf16> to vector<2x32xbf16>
    %c32_69 = arith.constant 32 : index
    %c0_70 = arith.constant 0 : index
    %212 = vector.load %arg9[%c32_69, %c0_70] : memref<160x32xbf16, #tpu.memory_space<vmem>>, vector<32x32xbf16>
    %cst_71 = arith.constant dense<0.000000e+00> : vector<2x32xf32>
    %213 = tpu.matmul %211, %212, %cst_71 {dimension_numbers = #tpu.dot_dimension_numbers<[1], [0], [0], [1], [0, 0, 1, 1], [], []>} : vector<2x32xbf16>, vector<32x32xbf16>, vector<2x32xf32> -> vector<2x32xf32>
    %214 = vector.extract_strided_slice %210 {offsets = [2, 0], sizes = [2, 32], strides = [1, 1]} : vector<6x32xbf16> to vector<2x32xbf16>
    %c64_72 = arith.constant 64 : index
    %c0_73 = arith.constant 0 : index
    %215 = vector.load %arg9[%c64_72, %c0_73] : memref<160x32xbf16, #tpu.memory_space<vmem>>, vector<32x32xbf16>
    %cst_74 = arith.constant dense<0.000000e+00> : vector<2x32xf32>
    %216 = tpu.matmul %214, %215, %cst_74 {dimension_numbers = #tpu.dot_dimension_numbers<[1], [0], [0], [1], [0, 0, 1, 1], [], []>} : vector<2x32xbf16>, vector<32x32xbf16>, vector<2x32xf32> -> vector<2x32xf32>
    %217 = arith.addf %213, %216 : vector<2x32xf32>
    %218 = vector.extract_strided_slice %210 {offsets = [4, 0], sizes = [2, 32], strides = [1, 1]} : vector<6x32xbf16> to vector<2x32xbf16>
    %c96 = arith.constant 96 : index
    %c0_75 = arith.constant 0 : index
    %219 = vector.load %arg9[%c96, %c0_75] : memref<160x32xbf16, #tpu.memory_space<vmem>>, vector<32x32xbf16>
    %cst_76 = arith.constant dense<0.000000e+00> : vector<2x32xf32>
    %220 = tpu.matmul %218, %219, %cst_76 {dimension_numbers = #tpu.dot_dimension_numbers<[1], [0], [0], [1], [0, 0, 1, 1], [], []>} : vector<2x32xbf16>, vector<32x32xbf16>, vector<2x32xf32> -> vector<2x32xf32>
    %221 = arith.addf %217, %220 : vector<2x32xf32>
    %222 = vector.extract_strided_slice %141 {offsets = [2, 0], sizes = [1, 32], strides = [1, 1]} : vector<6x96xf32> to vector<1x32xf32>
    %223 = vector.shape_cast %222 : vector<1x32xf32> to vector<32xf32>
    %224 = vector.shape_cast %223 : vector<32xf32> to vector<1x32xf32>
    %225 = vector.broadcast %224 : vector<1x32xf32> to vector<2x32xf32>
    %226 = arith.addf %221, %225 : vector<2x32xf32>
    %cst_77 = arith.constant 0.000000e+00 : f32
    %227 = vector.broadcast %cst_77 : f32 to vector<2x32xf32>
    %228 = arith.maximumf %226, %227 : vector<2x32xf32>
    %229 = vector.extract_strided_slice %141 {offsets = [3, 0], sizes = [1, 32], strides = [1, 1]} : vector<6x96xf32> to vector<1x32xf32>
    %230 = vector.shape_cast %229 : vector<1x32xf32> to vector<32xf32>
    %231 = vector.extract_strided_slice %141 {offsets = [4, 0], sizes = [1, 32], strides = [1, 1]} : vector<6x96xf32> to vector<1x32xf32>
    %232 = vector.shape_cast %231 : vector<1x32xf32> to vector<32xf32>
    %cst_78 = arith.constant dense<0.000000e+00> : vector<2xf32>
    %233 = vector.multi_reduction <add>, %228, %cst_78 [1] : vector<2x32xf32> to vector<2xf32>
    %234 = vector.shape_cast %233 : vector<2xf32> to vector<2x1xf32>
    %cst_79 = arith.constant 3.200000e+01 : f32
    %235 = vector.broadcast %cst_79 : f32 to vector<2x1xf32>
    %236 = arith.divf %234, %235 : vector<2x1xf32>
    %237 = vector.broadcast %236 : vector<2x1xf32> to vector<2x32xf32>
    %238 = arith.subf %228, %237 : vector<2x32xf32>
    %239 = arith.mulf %238, %238 : vector<2x32xf32>
    %cst_80 = arith.constant dense<0.000000e+00> : vector<2xf32>
    %240 = vector.multi_reduction <add>, %239, %cst_80 [1] : vector<2x32xf32> to vector<2xf32>
    %241 = vector.shape_cast %240 : vector<2xf32> to vector<2x1xf32>
    %cst_81 = arith.constant 3.200000e+01 : f32
    %242 = vector.broadcast %cst_81 : f32 to vector<2x1xf32>
    %243 = arith.divf %241, %242 : vector<2x1xf32>
    %cst_82 = arith.constant 9.99999974E-6 : f32
    %244 = vector.broadcast %cst_82 : f32 to vector<2x1xf32>
    %245 = arith.addf %243, %244 : vector<2x1xf32>
    %246 = math.rsqrt %245 : vector<2x1xf32>
    %247 = vector.broadcast %246 : vector<2x1xf32> to vector<2x32xf32>
    %248 = arith.mulf %238, %247 : vector<2x32xf32>
    %249 = vector.shape_cast %230 : vector<32xf32> to vector<1x32xf32>
    %250 = vector.broadcast %249 : vector<1x32xf32> to vector<2x32xf32>
    %251 = arith.mulf %248, %250 : vector<2x32xf32>
    %252 = vector.shape_cast %232 : vector<32xf32> to vector<1x32xf32>
    %253 = vector.broadcast %252 : vector<1x32xf32> to vector<2x32xf32>
    %254 = arith.addf %251, %253 : vector<2x32xf32>
    %255 = arith.truncf %254 : vector<2x32xf32> to vector<2x32xbf16>
    %c128_83 = arith.constant 128 : index
    %c0_84 = arith.constant 0 : index
    %256 = vector.load %arg9[%c128_83, %c0_84] : memref<160x32xbf16, #tpu.memory_space<vmem>>, vector<32x32xbf16>
    %cst_85 = arith.constant dense<0.000000e+00> : vector<2x32xf32>
    %257 = tpu.matmul %255, %256, %cst_85 {dimension_numbers = #tpu.dot_dimension_numbers<[1], [0], [0], [1], [0, 0, 1, 1], [], []>} : vector<2x32xbf16>, vector<32x32xbf16>, vector<2x32xf32> -> vector<2x32xf32>
    %258 = vector.extract_strided_slice %141 {offsets = [5, 0], sizes = [1, 32], strides = [1, 1]} : vector<6x96xf32> to vector<1x32xf32>
    %259 = vector.shape_cast %258 : vector<1x32xf32> to vector<32xf32>
    %260 = vector.shape_cast %259 : vector<32xf32> to vector<1x32xf32>
    %261 = vector.broadcast %260 : vector<1x32xf32> to vector<2x32xf32>
    %262 = arith.addf %257, %261 : vector<2x32xf32>
    %cst_86 = arith.constant dense<0xFF800000> : vector<2xf32>
    %263 = vector.multi_reduction <maximumf>, %262, %cst_86 [1] : vector<2x32xf32> to vector<2xf32>
    %264 = vector.shape_cast %263 : vector<2xf32> to vector<2x1xf32>
    %265 = vector.broadcast %264 : vector<2x1xf32> to vector<2x32xf32>
    %266 = arith.subf %262, %265 : vector<2x32xf32>
    %267 = math.exp %266 : vector<2x32xf32>
    %cst_87 = arith.constant dense<0.000000e+00> : vector<2xf32>
    %268 = vector.multi_reduction <add>, %267, %cst_87 [1] : vector<2x32xf32> to vector<2xf32>
    %269 = vector.shape_cast %268 : vector<2xf32> to vector<2x1xf32>
    %270 = vector.broadcast %269 : vector<2x1xf32> to vector<2x32xf32>
    %271 = arith.divf %267, %270 : vector<2x32xf32>
    %c0_88 = arith.constant 0 : index
    %c0_89 = arith.constant 0 : index
    %272 = vector.load %arg12[%c0_88, %c0_89] : memref<2x32xf32, #tpu.memory_space<vmem>>, vector<2x32xf32>
    tpu.vector_store %arg12[%c0_88, %c0_89], %271 {strides = array<i32>} : memref<2x32xf32, #tpu.memory_space<vmem>>, vector<2x32xf32>,
    return
  }
}

</mosaic_0001>

<llo_original>
// kernel: tpu_custom_call.1
$region0: #{tpu_custom_call.1}
  #allocation0 [shape = 'u32[]', space=smem, size = 0x4, offset = 0x4, fixed_abs, tag = 'smem constant byte address 0x4 - core index']
  #allocation1 [shape = 'u32[72,128]{1,0:T(1,128)}', space=vmem, size = 0x9000, scoped, tag = 'internal scratch']
  %s0 = inlined_call_operand.hbm [shape: f32[2,32], index: 0, kind: input, shape index: {}]
  %s1 = inlined_call_operand.hbm [shape: f32[2,48], index: 1, kind: input, shape index: {}]
  %s2 = inlined_call_operand.hbm [shape: f32[2,16], index: 2, kind: input, shape index: {}]
  %s3 = inlined_call_operand.vmem [shape: bf16[48,160], index: 3, kind: input, shape index: {}]
  %s4 = inlined_call_operand.vmem [shape: bf16[192,32], index: 4, kind: input, shape index: {}]
  %s5 = inlined_call_operand.vmem [shape: bf16[16,160], index: 5, kind: input, shape index: {}]
  %s6 = inlined_call_operand.vmem [shape: bf16[192,32], index: 6, kind: input, shape index: {}]
  %s7 = inlined_call_operand.vmem [shape: f32[16,160], index: 7, kind: input, shape index: {}]
  %s8 = inlined_call_operand.vmem [shape: bf16[32,96], index: 8, kind: input, shape index: {}]
  %s9 = inlined_call_operand.vmem [shape: bf16[160,32], index: 9, kind: input, shape index: {}]
  %s10 = inlined_call_operand.hbm [shape: f32[6,96], index: 10, kind: input, shape index: {}]
  %s11 = inlined_call_operand.vmem [shape: f32[192,128], index: 11, kind: input, shape index: {}]
  %s12 = inlined_call_operand.hbm [shape: f32[2,32], index: 12, kind: output, shape index: {}]
  %s13 = sld [smem:[#allocation0]]
  $region74: #{tpu_custom_call.1} parent=0
    _
  %s15 = ssub.s32 1, %s13
  %s16 = scalar_select 0, %s15, %s13
  $region1: #{tpu_custom_call.1} parent=0
    #allocation2 [shape = 'u8[1024]{0}', space=vmem, size = 0x400, scoped, tag = 'input window, operand 0, single buffered']
    #allocation3 [shape = 's32[1]{0}', space=sflag, size = 0x4, scoped, tag = 'scoped memory for tpu_custom_call.1']
    #allocation4 [shape = 's32[1]{0}', space=sflag, size = 0x4, scoped, tag = 'scoped memory for tpu_custom_call.1']
    #allocation5 [shape = 'u8[1024]{0}', space=vmem, size = 0x400, scoped, tag = 'input window, operand 1, single buffered']
    #allocation6 [shape = 's32[1]{0}', space=sflag, size = 0x4, scoped, tag = 'scoped memory for tpu_custom_call.1']
    #allocation7 [shape = 'u8[1024]{0}', space=vmem, size = 0x400, scoped, tag = 'input window, operand 2, single buffered']
    #allocation8 [shape = 'u8[4096]{0}', space=vmem, size = 0x1000, scoped, tag = 'input window, operand 10, single buffered']
    #allocation9 [shape = 's32[1]{0}', space=sflag, size = 0x4, scoped, tag = 'scoped memory for tpu_custom_call.1']
    #allocation10 [shape = 'u8[1024]{0}', space=vmem, size = 0x400, scoped, tag = 'output window, operand 0, single buffered']
    %17 = vsyncpa [#allocation3], 0
    %18 = vsyncpa [#allocation6], 0
    %19 = vsyncpa [#allocation9], 0
    %20 = vsyncpa [#allocation4], 0
    // Predicated region
    $region2: #{tpu_custom_call.1} parent=1 // pred_check
      _
    $region3: #{tpu_custom_call.1} parent=1 // pred_check_branch
      %22 = sbr.rel (0) target = $region5
    $region4: #{tpu_custom_call.1} parent=1 // pred_region
      %24 = vsyncadd [#allocation3], 0
      %s26 = sshll.u32 %s0, 4
      %s27 = int_to_ptr.hbm [resolvable:$true] %s26
      %s28 = sshll.u32 [#allocation2], 4
      %s29 = int_to_ptr.vmem [resolvable:$true] %s28
      %31 = dma.hbm_to_vmem [thread:$0]  %s27, 32, %s29, [#allocation3]
    $region5: #{tpu_custom_call.1} parent=1 // pred_fallthru
      _
    // Predicated region
    $region6: #{tpu_custom_call.1} parent=1 // pred_check
      _
    $region7: #{tpu_custom_call.1} parent=1 // pred_check_branch
      %33 = sbr.rel (0) target = $region9
    $region8: #{tpu_custom_call.1} parent=1 // pred_region
      %35 = vsyncadd [#allocation6], 0
      %s37 = sshll.u32 %s1, 4
      %s38 = int_to_ptr.hbm [resolvable:$true] %s37
      %s39 = sshll.u32 [#allocation5], 4
      %s40 = int_to_ptr.vmem [resolvable:$true] %s39
      %42 = dma.hbm_to_vmem [thread:$0]  %s38, 32, %s40, [#allocation6]
    $region9: #{tpu_custom_call.1} parent=1 // pred_fallthru
      _
    // Predicated region
    $region10: #{tpu_custom_call.1} parent=1 // pred_check
      _
    $region11: #{tpu_custom_call.1} parent=1 // pred_check_branch
      %44 = sbr.rel (0) target = $region13
    $region12: #{tpu_custom_call.1} parent=1 // pred_region
      %46 = vsyncadd [#allocation6], 0
      %s48 = sshll.u32 %s2, 4
      %s49 = int_to_ptr.hbm [resolvable:$true] %s48
      %s50 = sshll.u32 [#allocation7], 4
      %s51 = int_to_ptr.vmem [resolvable:$true] %s50
      %53 = dma.hbm_to_vmem [thread:$0]  %s49, 32, %s51, [#allocation6]
    $region13: #{tpu_custom_call.1} parent=1 // pred_fallthru
      _
    // Predicated region
    $region14: #{tpu_custom_call.1} parent=1 // pred_check
      _
    $region15: #{tpu_custom_call.1} parent=1 // pred_check_branch
      %55 = sbr.rel (0) target = $region17
    $region16: #{tpu_custom_call.1} parent=1 // pred_region
      _
    $region17: #{tpu_custom_call.1} parent=1 // pred_fallthru
      _
    // Predicated region
    $region18: #{tpu_custom_call.1} parent=1 // pred_check
      _
    $region19: #{tpu_custom_call.1} parent=1 // pred_check_branch
      %57 = sbr.rel (0) target = $region21
    $region20: #{tpu_custom_call.1} parent=1 // pred_region
      _
    $region21: #{tpu_custom_call.1} parent=1 // pred_fallthru
      _
    // Predicated region
    $region22: #{tpu_custom_call.1} parent=1 // pred_check
      _
    $region23: #{tpu_custom_call.1} parent=1 // pred_check_branch
      %59 = sbr.rel (0) target = $region25
    $region24: #{tpu_custom_call.1} parent=1 // pred_region
      _
    $region25: #{tpu_custom_call.1} parent=1 // pred_fallthru
      _
    // Predicated region
    $region26: #{tpu_custom_call.1} parent=1 // pred_check
      _
    $region27: #{tpu_custom_call.1} parent=1 // pred_check_branch
      %61 = sbr.rel (0) target = $region29
    $region28: #{tpu_custom_call.1} parent=1 // pred_region
      _
    $region29: #{tpu_custom_call.1} parent=1 // pred_fallthru
      _
    // Predicated region
    $region30: #{tpu_custom_call.1} parent=1 // pred_check
      _
    $region31: #{tpu_custom_call.1} parent=1 // pred_check_branch
      %63 = sbr.rel (0) target = $region33
    $region32: #{tpu_custom_call.1} parent=1 // pred_region
      _
    $region33: #{tpu_custom_call.1} parent=1 // pred_fallthru
      _
    // Predicated region
    $region34: #{tpu_custom_call.1} parent=1 // pred_check
      _
    $region35: #{tpu_custom_call.1} parent=1 // pred_check_branch
      %65 = sbr.rel (0) target = $region37
    $region36: #{tpu_custom_call.1} parent=1 // pred_region
      _
    $region37: #{tpu_custom_call.1} parent=1 // pred_fallthru
      _
    // Predicated region
    $region38: #{tpu_custom_call.1} parent=1 // pred_check
      _
    $region39: #{tpu_custom_call.1} parent=1 // pred_check_branch
      %67 = sbr.rel (0) target = $region41
    $region40: #{tpu_custom_call.1} parent=1 // pred_region
      _
    $region41: #{tpu_custom_call.1} parent=1 // pred_fallthru
      _
    // Predicated region
    $region42: #{tpu_custom_call.1} parent=1 // pred_check
      _
    $region43: #{tpu_custom_call.1} parent=1 // pred_check_branch
      %69 = sbr.rel (0) target = $region45
    $region44: #{tpu_custom_call.1} parent=1 // pred_region
      %71 = vsyncadd [#allocation9], 0
      %s73 = sshll.u32 %s10, 4
      %s74 = int_to_ptr.hbm [resolvable:$true] %s73
      %s75 = sshll.u32 [#allocation8], 4
      %s76 = int_to_ptr.vmem [resolvable:$true] %s75
      %78 = dma.hbm_to_vmem [thread:$0]  %s74, 128, %s76, [#allocation9]
    $region45: #{tpu_custom_call.1} parent=1 // pred_fallthru
      _
    // Predicated region
    $region46: #{tpu_custom_call.1} parent=1 // pred_check
      _
    $region47: #{tpu_custom_call.1} parent=1 // pred_check_branch
      %80 = sbr.rel (0) target = $region49
    $region48: #{tpu_custom_call.1} parent=1 // pred_region
      _
    $region49: #{tpu_custom_call.1} parent=1 // pred_fallthru
      _
    // Predicated region
    $region50: #{tpu_custom_call.1} parent=1 // pred_check
      _
    $region51: #{tpu_custom_call.1} parent=1 // pred_check_branch
      %82 = sbr.rel (0) target = $region53
    $region52: #{tpu_custom_call.1} parent=1 // pred_region
      %84 = dma.done [#allocation3], 32
    $region53: #{tpu_custom_call.1} parent=1 // pred_fallthru
      _
    // Predicated region
    $region54: #{tpu_custom_call.1} parent=1 // pred_check
      _
    $region55: #{tpu_custom_call.1} parent=1 // pred_check_branch
      %86 = sbr.rel (0) target = $region57
    $region56: #{tpu_custom_call.1} parent=1 // pred_region
      %88 = dma.done [#allocation6], 32
    $region57: #{tpu_custom_call.1} parent=1 // pred_fallthru
      _
    // Predicated region
    $region58: #{tpu_custom_call.1} parent=1 // pred_check
      _
    $region59: #{tpu_custom_call.1} parent=1 // pred_check_branch
      %90 = sbr.rel (0) target = $region61
    $region60: #{tpu_custom_call.1} parent=1 // pred_region
      %92 = dma.done [#allocation6], 32
    $region61: #{tpu_custom_call.1} parent=1 // pred_fallthru
      _
    // Predicated region
    $region62: #{tpu_custom_call.1} parent=1 // pred_check
      _
    $region63: #{tpu_custom_call.1} parent=1 // pred_check_branch
      %94 = sbr.rel (0) target = $region65
    $region64: #{tpu_custom_call.1} parent=1 // pred_region
      %96 = dma.done [#allocation9], 128
    $region65: #{tpu_custom_call.1} parent=1 // pred_fallthru
      _
    %v98 = vld [vmem:[%s11] sm:$0xff]
    %v99 = vld [vmem:[%s11 + $0x8] sm:$0xff]
    %v100 = vld [vmem:[%s11 + $0x10] sm:$0xff]
    %v101 = vld [vmem:[%s11 + $0x18] sm:$0xff]
    %v102 = vld [vmem:[%s11 + $0x20] sm:$0xff]
    %v103 = vld [vmem:[%s11 + $0x28] sm:$0xff]
    %v104 = vld [vmem:[%s11 + $0x30] sm:$0xff]
    %v105 = vld [vmem:[%s11 + $0x38] sm:$0xff]
    %v106 = vld [vmem:[%s11 + $0x40] sm:$0xff]
    %v107 = vld [vmem:[%s11 + $0x48] sm:$0xff]
    %v108 = vld [vmem:[%s11 + $0x50] sm:$0xff]
    %v109 = vld [vmem:[%s11 + $0x58] sm:$0xff]
    %v110 = vld [vmem:[%s11 + $0x60] sm:$0xff]
    %v111 = vld [vmem:[%s11 + $0x68] sm:$0xff]
    %v112 = vld [vmem:[%s11 + $0x70] sm:$0xff]
    %v113 = vld [vmem:[%s11 + $0x78] sm:$0xff]
    %v114 = vld [vmem:[%s11 + $0x80] sm:$0xff]
    %v115 = vld [vmem:[%s11 + $0x88] sm:$0xff]
    %v116 = vld [vmem:[%s11 + $0x90] sm:$0xff]
    %v117 = vld [vmem:[%s11 + $0x98] sm:$0xff]
    %v118 = vld [vmem:[%s11 + $0xa0] sm:$0xff]
    %v119 = vld [vmem:[%s11 + $0xa8] sm:$0xff]
    %v120 = vld [vmem:[%s11 + $0xb0] sm:$0xff]
    %v121 = vld [vmem:[%s11 + $0xb8] sm:$0xff]
    %v122 = vld [vmem:[%s7] sm:$0xff]
    %v123 = vld [vmem:[%s7 + $0x8] sm:$0xff]
    %v124 = vld [vmem:[%s7 + $0x10] sm:$0xff]
    %v125 = vld [vmem:[%s7 + $0x18] sm:$0xff]
    %v126 = vld [vmem:[#allocation5] sm:$0x3]
    %v127 = vpack.c.bf16 %v126, %v126
    %v128 = vld [vmem:[%s3] sm:$0xff]
    %v129 = vld [vmem:[%s3 + $0x8] sm:$0xff]
    %v130 = vld [vmem:[%s3 + $0x10] sm:$0xff]
    %v131 = vld [vmem:[%s3 + $0x18] sm:$0xff]
    %v132 = vld [vmem:[%s3 + $0x20] sm:$0xff]
    %v133 = vld [vmem:[%s3 + $0x28] sm:$0xff]
    %v134 = vperm.slane %v122, 0
    %v135 = vperm.slane %v123, 0
    %v142 = vunpack.c.l.b16 %v128
    %v143 = vunpack.c.h.b16 %v128
    %v144 = vunpack.c.l.b16 %v129
    %v145 = vunpack.c.h.b16 %v129
    %v146 = vunpack.c.l.b16 %v130
    %v147 = vunpack.c.h.b16 %v130
    %v148 = vunpack.c.l.b16 %v131
    %v149 = vunpack.c.h.b16 %v131
    %v150 = vunpack.c.l.b16 %v132
    %v151 = vunpack.c.h.b16 %v132
    %v152 = vunpack.c.l.b16 %v133
    %v153 = vunpack.c.h.b16 %v133
    %v154 = vpack.c.b16 %v144, %v142
    %v155 = vpack.c.b16 %v145, %v143
    %v156 = vpack.c.b16 %v148, %v146
    %v157 = vpack.c.b16 %v149, %v147
    %v158 = vpack.c.b16 %v152, %v150
    %v159 = vpack.c.b16 %v153, %v151
    %vm166 = vcmask 392192
    %v168 = vsel %vm166, %v127, 0
    %170 = vmatpush.bf16.msra.mxu0 0
    %171 = vmatpush.bf16.msra.mxu0 0
    %172 = vmatpush.bf16.msra.mxu0 0
    %173 = vmatpush.bf16.msra.mxu0 0
    %174 = vmatpush.bf16.msra.mxu0 0
    %175 = vmatpush.bf16.msra.mxu0 %v158
    %176 = vmatpush.bf16.msra.mxu0 %v156
    %177 = vmatpush.bf16.msra.mxu0 %v154
    %178 = vmatmul.bf16.gmra.mxu0 %v168
    %v179 = vpop.f32.mrf.mxu0
    %v180 = vadd.f32 %v134, %v179
    %v181 = vpop.f32.mrf.mxu0
    %182 = vdwg.mxu0
    %183 = vmatpush.bf16.msra.mxu0 0
    %184 = vmatpush.bf16.msra.mxu0 0
    %185 = vmatpush.bf16.msra.mxu0 0
    %186 = vmatpush.bf16.msra.mxu0 0
    %187 = vmatpush.bf16.msra.mxu0 0
    %188 = vmatpush.bf16.msra.mxu0 %v159
    %189 = vmatpush.bf16.msra.mxu0 %v157
    %190 = vmatpush.bf16.msra.mxu0 %v155
    %191 = vmatmul.bf16.gmra.mxu0 %v168
    %v192 = vpop.f32.mrf.mxu0
    %v193 = vadd.f32 %v135, %v192
    %v194 = vpop.f32.mrf.mxu0
    %195 = vdwg.mxu0
    %v196 = vmax.f32 %v180, 0.0
    %v197 = vmax.f32 %v193, 0.0
    %v198 = vpack.c.bf16 %v197, %v197
    %v199 = vld [vmem:[%s4 + $0x40] sm:$0xf]
    %v200 = vld [vmem:[%s4 + $0x44] sm:$0xf]
    %v201 = vld [vmem:[%s4 + $0x48] sm:$0xf]
    %v202 = vld [vmem:[%s4 + $0x4c] sm:$0xf]
    %v203 = vperm.slane %v122, 1
    %v208 = vunpack.c.l.b16 %v199
    %v209 = vunpack.c.l.b16 %v200
    %v210 = vunpack.c.l.b16 %v201
    %v211 = vunpack.c.l.b16 %v202
    %v212 = vpack.c.b16 %v209, %v208
    %v213 = vpack.c.b16 %v211, %v210
    %vm216 = vcmask 261120
    %v218 = vsel %vm216, %v198, 0
    %220 = vmatpush.bf16.msra.mxu0 0
    %221 = vmatpush.bf16.msra.mxu0 0
    %222 = vmatpush.bf16.msra.mxu0 0
    %223 = vmatpush.bf16.msra.mxu0 0
    %224 = vmatpush.bf16.msra.mxu0 0
    %225 = vmatpush.bf16.msra.mxu0 0
    %226 = vmatpush.bf16.msra.mxu0 %v213
    %227 = vmatpush.bf16.msra.mxu0 %v212
    %228 = vmatmul.bf16.gmra.mxu0 %v218
    %v229 = vpop.f32.mrf.mxu0
    %v230 = vadd.f32 %v203, %v229
    %v231 = vpop.f32.mrf.mxu0
    %232 = vdwg.mxu0
    %vm233 = vcmask 254976
    %v234 = vsel %vm233, %v230, -inf
    %235 = vmax.xlane.f32.xlu0 %v234
    %v236 = vpop.xlane.xlu0 %235
    %v237 = vsub.f32 %v230, %v236
    %v238 = vmul.f32 %v237, 1.442695
    %v239 = vpow.pop %v238
    %v240 = vsel %vm233, %v239, 0.0
    %241 = vadd.xlane.f32.xlu0 %v240
    %v242 = vpop.xlane.xlu0 %241
    %v243 = vrcp.pop %v242
    %v244 = vmul.f32 %v239, %v243
    %v246 = vsel %vm216, %v244, 0
    %248 = vmatpush.msra.mxu0 0.0
    %249 = vmatpush.msra.mxu0 0.0
    %250 = vmatpush.msra.mxu0 0.0
    %251 = vmatpush.msra.mxu0 0.0
    %252 = vmatpush.msra.mxu0 0.0
    %253 = vmatpush.msra.mxu0 0.0
    %254 = vmatpush.msra.mxu0 0.0
    %255 = vmatpush.msra.mxu0 0.0
    %256 = vmatpush.msra.mxu0 0.0
    %257 = vmatpush.msra.mxu0 0.0
    %258 = vmatpush.msra.mxu0 0.0
    %259 = vmatpush.msra.mxu0 0.0
    %260 = vmatpush.msra.mxu0 %v101
    %261 = vmatpush.msra.mxu0 %v100
    %262 = vmatpush.msra.mxu0 %v99
    %263 = vmatpush.msra.mxu0 %v98
    %264 = vmatmul.f32.gmra.mxu0 %v246
    %v265 = vpop.f32.mrf.mxu0
    %v266 = vadd.f32 0.0, %v265
    %267 = vdwg.mxu0
    %v268 = vmul.f32 %v196, %v266
    %v269 = vpack.c.bf16 %v268, %v268
    %v270 = vld [vmem:[%s4] sm:$0xf]
    %v271 = vld [vmem:[%s4 + $0x4] sm:$0xf]
    %v272 = vld [vmem:[%s4 + $0x8] sm:$0xf]
    %v273 = vld [vmem:[%s4 + $0xc] sm:$0xf]
    %v274 = vld [vmem:[%s4 + $0x10] sm:$0xf]
    %v275 = vld [vmem:[%s4 + $0x14] sm:$0xf]
    %v276 = vld [vmem:[%s4 + $0x18] sm:$0xf]
    %v277 = vld [vmem:[%s4 + $0x1c] sm:$0xf]
    %v278 = vld [vmem:[%s4 + $0x20] sm:$0xf]
    %v279 = vld [vmem:[%s4 + $0x24] sm:$0xf]
    %v280 = vld [vmem:[%s4 + $0x28] sm:$0xf]
    %v281 = vld [vmem:[%s4 + $0x2c] sm:$0xf]
    %v282 = vld [vmem:[%s4 + $0x30] sm:$0xf]
    %v283 = vld [vmem:[%s4 + $0x34] sm:$0xf]
    %v284 = vld [vmem:[%s4 + $0x38] sm:$0xf]
    %v285 = vld [vmem:[%s4 + $0x3c] sm:$0xf]
    %v286 = vpack.c.bf16 %v244, %v244
    %v287 = vld [vmem:[%s4 + $0x50] sm:$0xf]
    %v288 = vld [vmem:[%s4 + $0x54] sm:$0xf]
    %v289 = vld [vmem:[%s4 + $0x58] sm:$0xf]
    %v290 = vld [vmem:[%s4 + $0x5c] sm:$0xf]
    %v295 = vunpack.c.l.b16 %v287
    %v296 = vunpack.c.l.b16 %v288
    %v297 = vunpack.c.l.b16 %v289
    %v298 = vunpack.c.l.b16 %v290
    %v299 = vpack.c.b16 %v296, %v295
    %v300 = vpack.c.b16 %v298, %v297
    %v304 = vsel %vm216, %v286, 0
    %306 = vmatpush.bf16.msra.mxu0 0
    %307 = vmatpush.bf16.msra.mxu0 0
    %308 = vmatpush.bf16.msra.mxu0 0
    %309 = vmatpush.bf16.msra.mxu0 0
    %310 = vmatpush.bf16.msra.mxu0 0
    %311 = vmatpush.bf16.msra.mxu0 0
    %312 = vmatpush.bf16.msra.mxu0 %v300
    %313 = vmatpush.bf16.msra.mxu0 %v299
    %314 = vmatmul.bf16.gmra.mxu0 %v304
    %v315 = vpop.f32.mrf.mxu0
    %v316 = vadd.f32 0.0, %v315
    %v317 = vpop.f32.mrf.mxu0
    %318 = vdwg.mxu0
    %v335 = vunpack.c.l.b16 %v270
    %v336 = vunpack.c.l.b16 %v271
    %v337 = vunpack.c.l.b16 %v272
    %v338 = vunpack.c.l.b16 %v273
    %v339 = vunpack.c.l.b16 %v274
    %v340 = vunpack.c.l.b16 %v275
    %v341 = vunpack.c.l.b16 %v276
    %v342 = vunpack.c.l.b16 %v277
    %v343 = vunpack.c.l.b16 %v278
    %v344 = vunpack.c.l.b16 %v279
    %v345 = vunpack.c.l.b16 %v280
    %v346 = vunpack.c.l.b16 %v281
    %v347 = vunpack.c.l.b16 %v282
    %v348 = vunpack.c.l.b16 %v283
    %v349 = vunpack.c.l.b16 %v284
    %v350 = vunpack.c.l.b16 %v285
    %v351 = vpack.c.b16 %v336, %v335
    %v352 = vpack.c.b16 %v338, %v337
    %v353 = vpack.c.b16 %v340, %v339
    %v354 = vpack.c.b16 %v342, %v341
    %v355 = vpack.c.b16 %v344, %v343
    %v356 = vpack.c.b16 %v346, %v345
    %v357 = vpack.c.b16 %v348, %v347
    %v358 = vpack.c.b16 %v350, %v349
    %367 = vmatpush.bf16.msra.mxu0 %v358
    %368 = vmatpush.bf16.msra.mxu0 %v357
    %369 = vmatpush.bf16.msra.mxu0 %v356
    %370 = vmatpush.bf16.msra.mxu0 %v355
    %371 = vmatpush.bf16.msra.mxu0 %v354
    %372 = vmatpush.bf16.msra.mxu0 %v353
    %373 = vmatpush.bf16.msra.mxu0 %v352
    %374 = vmatpush.bf16.msra.mxu0 %v351
    %375 = vmatmul.bf16.gmra.mxu0 %v269
    %v376 = vpop.f32.mrf.mxu0
    %v377 = vadd.f32 %v316, %v376
    %v378 = vpop.f32.mrf.mxu0
    %379 = vdwg.mxu0
    %v380 = vsel %vm233, %v377, 0.0
    %381 = vadd.xlane.f32.xlu0 %v380
    %v382 = vpop.xlane.xlu0 %381
    %v383 = vrcp.pop 32.0
    %v384 = vmul.f32 32.0, %v383
    %v385 = vsub.f32 1.0, %v384
    %v386 = vmul.f32 %v383, %v385
    %v387 = vadd.f32 %v383, %v386
    %vm388 = vweird.f32 %v383
    %v389 = vsel %vm388, %v383, %v387
    %v390 = vmul.f32 %v382, %v389
    %v391 = vsub.f32 %v377, %v390
    %v392 = vmul.f32 %v391, %v391
    %v393 = vsel %vm233, %v392, 0.0
    %394 = vadd.xlane.f32.xlu0 %v393
    %v395 = vpop.xlane.xlu0 %394
    %v396 = vmul.f32 %v395, %v389
    %v397 = vadd.f32 %v396, 1e-05
    %v398 = vrsqrt.pop %v397
    %v399 = vmul.f32 %v398, %v397
    %v400 = vmul.f32 %v399, %v398
    %v401 = vmul.f32 0.5, %v400
    %v402 = vsub.f32 1.5, %v401
    %v403 = vmul.f32 %v398, %v402
    %vm404 = vweird.f32 %v397
    %vm405 = vweird.f32 %v398
    %vm406 = vmor %vm404, %vm405
    %v407 = vsel %vm406, %v398, %v403
    %v408 = vmul.f32 %v391, %v407
    %v409 = vperm.slane %v122, 2
    %v410 = vmul.f32 %v408, %v409
    %v411 = vperm.slane %v122, 3
    %v412 = vadd.f32 %v410, %v411
    %v413 = vld [vmem:[#allocation7] sm:$0x3]
    %v414 = vpack.c.bf16 %v413, %v413
    %v415 = vld [vmem:[%s5] sm:$0xff]
    %v416 = vld [vmem:[%s5 + $0x8] sm:$0xff]
    %v417 = vperm.slane %v124, 0
    %v418 = vperm.slane %v125, 0
    %v421 = vunpack.c.l.b16 %v415
    %v422 = vunpack.c.h.b16 %v415
    %v423 = vunpack.c.l.b16 %v416
    %v424 = vunpack.c.h.b16 %v416
    %v425 = vpack.c.b16 %v423, %v421
    %v426 = vpack.c.b16 %v424, %v422
    %vm429 = vcmask 130048
    %v431 = vsel %vm429, %v414, 0
    %433 = vmatpush.bf16.msra.mxu0 0
    %434 = vmatpush.bf16.msra.mxu0 0
    %435 = vmatpush.bf16.msra.mxu0 0
    %436 = vmatpush.bf16.msra.mxu0 0
    %437 = vmatpush.bf16.msra.mxu0 0
    %438 = vmatpush.bf16.msra.mxu0 0
    %439 = vmatpush.bf16.msra.mxu0 0
    %440 = vmatpush.bf16.msra.mxu0 %v425
    %441 = vmatmul.bf16.gmra.mxu0 %v431
    %v442 = vpop.f32.mrf.mxu0
    %v443 = vadd.f32 %v417, %v442
    %v444 = vpop.f32.mrf.mxu0
    %445 = vdwg.mxu0
    %446 = vmatpush.bf16.msra.mxu0 0
    %447 = vmatpush.bf16.msra.mxu0 0
    %448 = vmatpush.bf16.msra.mxu0 0
    %449 = vmatpush.bf16.msra.mxu0 0
    %450 = vmatpush.bf16.msra.mxu0 0
    %451 = vmatpush.bf16.msra.mxu0 0
    %452 = vmatpush.bf16.msra.mxu0 0
    %453 = vmatpush.bf16.msra.mxu0 %v426
    %454 = vmatmul.bf16.gmra.mxu0 %v431
    %v455 = vpop.f32.mrf.mxu0
    %v456 = vadd.f32 %v418, %v455
    %v457 = vpop.f32.mrf.mxu0
    %458 = vdwg.mxu0
    %v459 = vmax.f32 %v443, 0.0
    %v460 = vmax.f32 %v456, 0.0
    %v461 = vpack.c.bf16 %v460, %v460
    %v462 = vld [vmem:[%s6 + $0x40] sm:$0xf]
    %v463 = vld [vmem:[%s6 + $0x44] sm:$0xf]
    %v464 = vld [vmem:[%s6 + $0x48] sm:$0xf]
    %v465 = vld [vmem:[%s6 + $0x4c] sm:$0xf]
    %v466 = vperm.slane %v124, 1
    %v471 = vunpack.c.l.b16 %v462
    %v472 = vunpack.c.l.b16 %v463
    %v473 = vunpack.c.l.b16 %v464
    %v474 = vunpack.c.l.b16 %v465
    %v475 = vpack.c.b16 %v472, %v471
    %v476 = vpack.c.b16 %v474, %v473
    %v480 = vsel %vm216, %v461, 0
    %482 = vmatpush.bf16.msra.mxu0 0
    %483 = vmatpush.bf16.msra.mxu0 0
    %484 = vmatpush.bf16.msra.mxu0 0
    %485 = vmatpush.bf16.msra.mxu0 0
    %486 = vmatpush.bf16.msra.mxu0 0
    %487 = vmatpush.bf16.msra.mxu0 0
    %488 = vmatpush.bf16.msra.mxu0 %v476
    %489 = vmatpush.bf16.msra.mxu0 %v475
    %490 = vmatmul.bf16.gmra.mxu0 %v480
    %v491 = vpop.f32.mrf.mxu0
    %v492 = vadd.f32 %v466, %v491
    %v493 = vpop.f32.mrf.mxu0
    %494 = vdwg.mxu0
    %v495 = vsel %vm233, %v492, -inf
    %496 = vmax.xlane.f32.xlu0 %v495
    %v497 = vpop.xlane.xlu0 %496
    %v498 = vsub.f32 %v492, %v497
    %v499 = vmul.f32 %v498, 1.442695
    %v500 = vpow.pop %v499
    %v501 = vsel %vm233, %v500, 0.0
    %502 = vadd.xlane.f32.xlu0 %v501
    %v503 = vpop.xlane.xlu0 %502
    %v504 = vrcp.pop %v503
    %v505 = vmul.f32 %v500, %v504
    %v507 = vsel %vm216, %v505, 0
    %509 = vmatpush.msra.mxu0 0.0
    %510 = vmatpush.msra.mxu0 0.0
    %511 = vmatpush.msra.mxu0 0.0
    %512 = vmatpush.msra.mxu0 0.0
    %513 = vmatpush.msra.mxu0 0.0
    %514 = vmatpush.msra.mxu0 0.0
    %515 = vmatpush.msra.mxu0 0.0
    %516 = vmatpush.msra.mxu0 0.0
    %517 = vmatpush.msra.mxu0 0.0
    %518 = vmatpush.msra.mxu0 0.0
    %519 = vmatpush.msra.mxu0 0.0
    %520 = vmatpush.msra.mxu0 0.0
    %521 = vmatpush.msra.mxu0 %v101
    %522 = vmatpush.msra.mxu0 %v100
    %523 = vmatpush.msra.mxu0 %v99
    %524 = vmatpush.msra.mxu0 %v98
    %525 = vmatmul.f32.gmra.mxu0 %v507
    %v526 = vpop.f32.mrf.mxu0
    %v527 = vadd.f32 0.0, %v526
    %528 = vdwg.mxu0
    %v529 = vmul.f32 %v459, %v527
    %v530 = vpack.c.bf16 %v529, %v529
    %v531 = vld [vmem:[%s6] sm:$0xf]
    %v532 = vld [vmem:[%s6 + $0x4] sm:$0xf]
    %v533 = vld [vmem:[%s6 + $0x8] sm:$0xf]
    %v534 = vld [vmem:[%s6 + $0xc] sm:$0xf]
    %v535 = vld [vmem:[%s6 + $0x10] sm:$0xf]
    %v536 = vld [vmem:[%s6 + $0x14] sm:$0xf]
    %v537 = vld [vmem:[%s6 + $0x18] sm:$0xf]
    %v538 = vld [vmem:[%s6 + $0x1c] sm:$0xf]
    %v539 = vld [vmem:[%s6 + $0x20] sm:$0xf]
    %v540 = vld [vmem:[%s6 + $0x24] sm:$0xf]
    %v541 = vld [vmem:[%s6 + $0x28] sm:$0xf]
    %v542 = vld [vmem:[%s6 + $0x2c] sm:$0xf]
    %v543 = vld [vmem:[%s6 + $0x30] sm:$0xf]
    %v544 = vld [vmem:[%s6 + $0x34] sm:$0xf]
    %v545 = vld [vmem:[%s6 + $0x38] sm:$0xf]
    %v546 = vld [vmem:[%s6 + $0x3c] sm:$0xf]
    %v547 = vpack.c.bf16 %v505, %v505
    %v548 = vld [vmem:[%s6 + $0x50] sm:$0xf]
    %v549 = vld [vmem:[%s6 + $0x54] sm:$0xf]
    %v550 = vld [vmem:[%s6 + $0x58] sm:$0xf]
    %v551 = vld [vmem:[%s6 + $0x5c] sm:$0xf]
    %v556 = vunpack.c.l.b16 %v548
    %v557 = vunpack.c.l.b16 %v549
    %v558 = vunpack.c.l.b16 %v550
    %v559 = vunpack.c.l.b16 %v551
    %v560 = vpack.c.b16 %v557, %v556
    %v561 = vpack.c.b16 %v559, %v558
    %v565 = vsel %vm216, %v547, 0
    %567 = vmatpush.bf16.msra.mxu0 0
    %568 = vmatpush.bf16.msra.mxu0 0
    %569 = vmatpush.bf16.msra.mxu0 0
    %570 = vmatpush.bf16.msra.mxu0 0
    %571 = vmatpush.bf16.msra.mxu0 0
    %572 = vmatpush.bf16.msra.mxu0 0
    %573 = vmatpush.bf16.msra.mxu0 %v561
    %574 = vmatpush.bf16.msra.mxu0 %v560
    %575 = vmatmul.bf16.gmra.mxu0 %v565
    %v576 = vpop.f32.mrf.mxu0
    %v577 = vadd.f32 0.0, %v576
    %v578 = vpop.f32.mrf.mxu0
    %579 = vdwg.mxu0
    %v596 = vunpack.c.l.b16 %v531
    %v597 = vunpack.c.l.b16 %v532
    %v598 = vunpack.c.l.b16 %v533
    %v599 = vunpack.c.l.b16 %v534
    %v600 = vunpack.c.l.b16 %v535
    %v601 = vunpack.c.l.b16 %v536
    %v602 = vunpack.c.l.b16 %v537
    %v603 = vunpack.c.l.b16 %v538
    %v604 = vunpack.c.l.b16 %v539
    %v605 = vunpack.c.l.b16 %v540
    %v606 = vunpack.c.l.b16 %v541
    %v607 = vunpack.c.l.b16 %v542
    %v608 = vunpack.c.l.b16 %v543
    %v609 = vunpack.c.l.b16 %v544
    %v610 = vunpack.c.l.b16 %v545
    %v611 = vunpack.c.l.b16 %v546
    %v612 = vpack.c.b16 %v597, %v596
    %v613 = vpack.c.b16 %v599, %v598
    %v614 = vpack.c.b16 %v601, %v600
    %v615 = vpack.c.b16 %v603, %v602
    %v616 = vpack.c.b16 %v605, %v604
    %v617 = vpack.c.b16 %v607, %v606
    %v618 = vpack.c.b16 %v609, %v608
    %v619 = vpack.c.b16 %v611, %v610
    %628 = vmatpush.bf16.msra.mxu0 %v619
    %629 = vmatpush.bf16.msra.mxu0 %v618
    %630 = vmatpush.bf16.msra.mxu0 %v617
    %631 = vmatpush.bf16.msra.mxu0 %v616
    %632 = vmatpush.bf16.msra.mxu0 %v615
    %633 = vmatpush.bf16.msra.mxu0 %v614
    %634 = vmatpush.bf16.msra.mxu0 %v613
    %635 = vmatpush.bf16.msra.mxu0 %v612
    %636 = vmatmul.bf16.gmra.mxu0 %v530
    %v637 = vpop.f32.mrf.mxu0
    %v638 = vadd.f32 %v577, %v637
    %v639 = vpop.f32.mrf.mxu0
    %640 = vdwg.mxu0
    %v641 = vsel %vm233, %v638, 0.0
    %642 = vadd.xlane.f32.xlu0 %v641
    %v643 = vpop.xlane.xlu0 %642
    %v644 = vmul.f32 %v643, %v389
    %v645 = vsub.f32 %v638, %v644
    %v646 = vmul.f32 %v645, %v645
    %v647 = vsel %vm233, %v646, 0.0
    %648 = vadd.xlane.f32.xlu0 %v647
    %v649 = vpop.xlane.xlu0 %648
    %v650 = vmul.f32 %v649, %v389
    %v651 = vadd.f32 %v650, 1e-05
    %v652 = vrsqrt.pop %v651
    %v653 = vmul.f32 %v652, %v651
    %v654 = vmul.f32 %v653, %v652
    %v655 = vmul.f32 0.5, %v654
    %v656 = vsub.f32 1.5, %v655
    %v657 = vmul.f32 %v652, %v656
    %vm658 = vweird.f32 %v651
    %vm659 = vweird.f32 %v652
    %vm660 = vmor %vm658, %vm659
    %v661 = vsel %vm660, %v652, %v657
    %v662 = vmul.f32 %v645, %v661
    %v663 = vperm.slane %v124, 2
    %v664 = vmul.f32 %v662, %v663
    %v665 = vperm.slane %v124, 3
    %v666 = vadd.f32 %v664, %v665
    %v667 = vld [vmem:[#allocation2] sm:$0x3]
    %v668 = vmax.f32 %v667, 0.0
    %v669 = vld [vmem:[#allocation8] sm:$0x3f]
    %v671 = vrot.slane %v412, 6
    %v674 = vrot.slane %v666, 4
    %vm676 = vcmask 1041408
    %v677 = vsel %vm676, %v668, %v671
    %vm678 = vcmask 1043456
    %v679 = vsel %vm678, %v677, %v674
    %v680 = vpack.c.bf16 %v679, %v679
    %v681 = vld [vmem:[%s8] sm:$0xf]
    %v682 = vld [vmem:[%s8 + $0x4] sm:$0xf]
    %v683 = vld [vmem:[%s8 + $0x8] sm:$0xf]
    %v684 = vld [vmem:[%s8 + $0xc] sm:$0xf]
    %v685 = vperm.slane %v669, 0
    %v690 = vunpack.c.l.b16 %v681
    %v691 = vunpack.c.l.b16 %v682
    %v692 = vunpack.c.l.b16 %v683
    %v693 = vunpack.c.l.b16 %v684
    %v694 = vpack.c.b16 %v691, %v690
    %v695 = vpack.c.b16 %v693, %v692
    %v699 = vsel %vm216, %v680, 0
    %701 = vmatpush.bf16.msra.mxu0 0
    %702 = vmatpush.bf16.msra.mxu0 0
    %703 = vmatpush.bf16.msra.mxu0 0
    %704 = vmatpush.bf16.msra.mxu0 0
    %705 = vmatpush.bf16.msra.mxu0 0
    %706 = vmatpush.bf16.msra.mxu0 0
    %707 = vmatpush.bf16.msra.mxu0 %v695
    %708 = vmatpush.bf16.msra.mxu0 %v694
    %709 = vmatmul.bf16.gmra.mxu0 %v699
    %v710 = vpop.f32.mrf.mxu0
    %v711 = vadd.f32 %v685, %v710
    %v712 = vpop.f32.mrf.mxu0
    %713 = vdwg.mxu0
    %v715 = vrot.slane %v711, 6
    %v717 = vrot.slane %v711, 4
    %v719 = vsel %vm676, %v711, %v715
    %v720 = vsel %vm678, %v719, %v717
    %722 = vrot.lane.b32.xlu0 %v720, 96
    %v723 = vpop.permute.xlu0 %722
    %v725 = vmul.f32 %v711, %v723
    %v727 = vsel %vm216, %v725, 0
    %729 = vmatpush.msra.mxu0 0.0
    %730 = vmatpush.msra.mxu0 0.0
    %731 = vmatpush.msra.mxu0 0.0
    %732 = vmatpush.msra.mxu0 0.0
    %733 = vmatpush.msra.mxu0 0.0
    %734 = vmatpush.msra.mxu0 0.0
    %735 = vmatpush.msra.mxu0 0.0
    %736 = vmatpush.msra.mxu0 0.0
    %737 = vmatpush.msra.mxu0 0.0
    %738 = vmatpush.msra.mxu0 0.0
    %739 = vmatpush.msra.mxu0 0.0
    %740 = vmatpush.msra.mxu0 0.0
    %741 = vmatpush.msra.mxu0 %v105
    %742 = vmatpush.msra.mxu0 %v104
    %743 = vmatpush.msra.mxu0 %v103
    %744 = vmatpush.msra.mxu0 %v102
    %745 = vmatmul.f32.gmra.mxu0 %v727
    %v746 = vpop.f32.mrf.mxu0
    %v747 = vadd.f32 0.0, %v746
    %748 = vdwg.mxu0
    %v749 = vmul.f32 %v747, 0.5
    %v750 = vrot.slane %v711, 2
    %v752 = vsel %vm676, %v750, %v711
    %v753 = vsel %vm678, %v752, %v715
    %755 = vrot.lane.b32.xlu0 %v753, 96
    %v756 = vpop.permute.xlu0 %755
    %v758 = vmul.f32 %v711, %v756
    %v760 = vsel %vm216, %v758, 0
    %762 = vmatpush.msra.mxu0 0.0
    %763 = vmatpush.msra.mxu0 0.0
    %764 = vmatpush.msra.mxu0 0.0
    %765 = vmatpush.msra.mxu0 0.0
    %766 = vmatpush.msra.mxu0 0.0
    %767 = vmatpush.msra.mxu0 0.0
    %768 = vmatpush.msra.mxu0 0.0
    %769 = vmatpush.msra.mxu0 0.0
    %770 = vmatpush.msra.mxu0 0.0
    %771 = vmatpush.msra.mxu0 0.0
    %772 = vmatpush.msra.mxu0 0.0
    %773 = vmatpush.msra.mxu0 0.0
    %774 = vmatpush.msra.mxu0 %v105
    %775 = vmatpush.msra.mxu0 %v104
    %776 = vmatpush.msra.mxu0 %v103
    %777 = vmatpush.msra.mxu0 %v102
    %778 = vmatmul.f32.gmra.mxu0 %v760
    %v779 = vpop.f32.mrf.mxu0
    %v780 = vadd.f32 0.0, %v779
    %781 = vdwg.mxu0
    %v782 = vmul.f32 %v780, 0.5
    %v783 = vsel %vm676, %v717, %v750
    %v784 = vsel %vm678, %v783, %v711
    %786 = vrot.lane.b32.xlu0 %v784, 96
    %v787 = vpop.permute.xlu0 %786
    %v789 = vmul.f32 %v711, %v787
    %v791 = vsel %vm216, %v789, 0
    %793 = vmatpush.msra.mxu0 0.0
    %794 = vmatpush.msra.mxu0 0.0
    %795 = vmatpush.msra.mxu0 0.0
    %796 = vmatpush.msra.mxu0 0.0
    %797 = vmatpush.msra.mxu0 0.0
    %798 = vmatpush.msra.mxu0 0.0
    %799 = vmatpush.msra.mxu0 0.0
    %800 = vmatpush.msra.mxu0 0.0
    %801 = vmatpush.msra.mxu0 0.0
    %802 = vmatpush.msra.mxu0 0.0
    %803 = vmatpush.msra.mxu0 0.0
    %804 = vmatpush.msra.mxu0 0.0
    %805 = vmatpush.msra.mxu0 %v105
    %806 = vmatpush.msra.mxu0 %v104
    %807 = vmatpush.msra.mxu0 %v103
    %808 = vmatpush.msra.mxu0 %v102
    %809 = vmatmul.f32.gmra.mxu0 %v791
    %v810 = vpop.f32.mrf.mxu0
    %v811 = vadd.f32 0.0, %v810
    %812 = vdwg.mxu0
    %v813 = vmul.f32 %v811, 0.5
    %v814 = vmax.f32 %v749, %v782
    %v815 = vmax.f32 %v814, %v813
    %v816 = vsub.f32 %v749, %v815
    %v817 = vmul.f32 %v816, 1.442695
    %v818 = vpow.pop %v817
    %v819 = vsub.f32 %v782, %v815
    %v820 = vmul.f32 %v819, 1.442695
    %v821 = vpow.pop %v820
    %v822 = vsub.f32 %v813, %v815
    %v823 = vmul.f32 %v822, 1.442695
    %v824 = vpow.pop %v823
    %v825 = vadd.f32 %v818, %v821
    %v826 = vadd.f32 %v825, %v824
    %v827 = vrcp.pop %v826
    %v828 = vmul.f32 %v818, %v827
    %829 = vmatpush.msra.mxu0 %v121
    %830 = vmatpush.msra.mxu0 %v120
    %831 = vmatpush.msra.mxu0 %v119
    %832 = vmatpush.msra.mxu0 %v118
    %833 = vmatpush.msra.mxu0 %v117
    %834 = vmatpush.msra.mxu0 %v116
    %835 = vmatpush.msra.mxu0 %v115
    %836 = vmatpush.msra.mxu0 %v114
    %837 = vmatpush.msra.mxu0 %v113
    %838 = vmatpush.msra.mxu0 %v112
    %839 = vmatpush.msra.mxu0 %v111
    %840 = vmatpush.msra.mxu0 %v110
    %841 = vmatpush.msra.mxu0 %v109
    %842 = vmatpush.msra.mxu0 %v108
    %843 = vmatpush.msra.mxu0 %v107
    %844 = vmatpush.msra.mxu0 %v106
    %845 = vmatmul.f32.gmra.mxu0 %v828
    %v846 = vpop.f32.mrf.mxu0
    %v847 = vadd.f32 0.0, %v846
    %848 = vdwg.mxu0
    %849 = vrot.lane.b32.xlu0 %v720, 64
    %v850 = vpop.permute.xlu0 %849
    %v852 = vmul.f32 %v847, %v850
    %v853 = vadd.f32 %v852, 0.0
    %v854 = vmul.f32 %v821, %v827
    %855 = vmatpush.msra.mxu0 %v121
    %856 = vmatpush.msra.mxu0 %v120
    %857 = vmatpush.msra.mxu0 %v119
    %858 = vmatpush.msra.mxu0 %v118
    %859 = vmatpush.msra.mxu0 %v117
    %860 = vmatpush.msra.mxu0 %v116
    %861 = vmatpush.msra.mxu0 %v115
    %862 = vmatpush.msra.mxu0 %v114
    %863 = vmatpush.msra.mxu0 %v113
    %864 = vmatpush.msra.mxu0 %v112
    %865 = vmatpush.msra.mxu0 %v111
    %866 = vmatpush.msra.mxu0 %v110
    %867 = vmatpush.msra.mxu0 %v109
    %868 = vmatpush.msra.mxu0 %v108
    %869 = vmatpush.msra.mxu0 %v107
    %870 = vmatpush.msra.mxu0 %v106
    %871 = vmatmul.f32.gmra.mxu0 %v854
    %v872 = vpop.f32.mrf.mxu0
    %v873 = vadd.f32 0.0, %v872
    %874 = vdwg.mxu0
    %875 = vrot.lane.b32.xlu0 %v753, 64
    %v876 = vpop.permute.xlu0 %875
    %v878 = vmul.f32 %v873, %v876
    %v879 = vadd.f32 %v853, %v878
    %v880 = vmul.f32 %v824, %v827
    %881 = vmatpush.msra.mxu0 %v121
    %882 = vmatpush.msra.mxu0 %v120
    %883 = vmatpush.msra.mxu0 %v119
    %884 = vmatpush.msra.mxu0 %v118
    %885 = vmatpush.msra.mxu0 %v117
    %886 = vmatpush.msra.mxu0 %v116
    %887 = vmatpush.msra.mxu0 %v115
    %888 = vmatpush.msra.mxu0 %v114
    %889 = vmatpush.msra.mxu0 %v113
    %890 = vmatpush.msra.mxu0 %v112
    %891 = vmatpush.msra.mxu0 %v111
    %892 = vmatpush.msra.mxu0 %v110
    %893 = vmatpush.msra.mxu0 %v109
    %894 = vmatpush.msra.mxu0 %v108
    %895 = vmatpush.msra.mxu0 %v107
    %896 = vmatpush.msra.mxu0 %v106
    %897 = vmatmul.f32.gmra.mxu0 %v880
    %v898 = vpop.f32.mrf.mxu0
    %v899 = vadd.f32 0.0, %v898
    %900 = vdwg.mxu0
    %901 = vrot.lane.b32.xlu0 %v784, 64
    %v902 = vpop.permute.xlu0 %901
    %v904 = vmul.f32 %v899, %v902
    %v905 = vadd.f32 %v879, %v904
    %v906 = vpack.c.bf16 %v905, %v905
    %v907 = vld [vmem:[%s9] sm:$0xf]
    %v908 = vld [vmem:[%s9 + $0x4] sm:$0xf]
    %v909 = vld [vmem:[%s9 + $0x8] sm:$0xf]
    %v910 = vld [vmem:[%s9 + $0xc] sm:$0xf]
    %v911 = vperm.slane %v669, 1
    %v916 = vunpack.c.l.b16 %v907
    %v917 = vunpack.c.l.b16 %v908
    %v918 = vunpack.c.l.b16 %v909
    %v919 = vunpack.c.l.b16 %v910
    %v920 = vpack.c.b16 %v917, %v916
    %v921 = vpack.c.b16 %v919, %v918
    %v925 = vsel %vm216, %v906, 0
    %927 = vmatpush.bf16.msra.mxu0 0
    %928 = vmatpush.bf16.msra.mxu0 0
    %929 = vmatpush.bf16.msra.mxu0 0
    %930 = vmatpush.bf16.msra.mxu0 0
    %931 = vmatpush.bf16.msra.mxu0 0
    %932 = vmatpush.bf16.msra.mxu0 0
    %933 = vmatpush.bf16.msra.mxu0 %v921
    %934 = vmatpush.bf16.msra.mxu0 %v920
    %935 = vmatmul.bf16.gmra.mxu0 %v925
    %v936 = vpop.f32.mrf.mxu0
    %v937 = vadd.f32 %v911, %v936
    %v938 = vpop.f32.mrf.mxu0
    %939 = vdwg.mxu0
    %v940 = vpack.c.bf16 %v937, %v937
    %v941 = vld [vmem:[%s9 + $0x10] sm:$0xf]
    %v942 = vld [vmem:[%s9 + $0x14] sm:$0xf]
    %v943 = vld [vmem:[%s9 + $0x18] sm:$0xf]
    %v944 = vld [vmem:[%s9 + $0x1c] sm:$0xf]
    %v945 = vld [vmem:[%s9 + $0x20] sm:$0xf]
    %v946 = vld [vmem:[%s9 + $0x24] sm:$0xf]
    %v947 = vld [vmem:[%s9 + $0x28] sm:$0xf]
    %v948 = vld [vmem:[%s9 + $0x2c] sm:$0xf]
    %v950 = vunpack.c.l.b16 %v940
    %v951 = vpack.c.b16 %v950, %v950
    %v952 = vrot.slane %v951, 1
    %v957 = vunpack.c.l.b16 %v945
    %v958 = vunpack.c.l.b16 %v946
    %v959 = vunpack.c.l.b16 %v947
    %v960 = vunpack.c.l.b16 %v948
    %v961 = vpack.c.b16 %v958, %v957
    %v962 = vpack.c.b16 %v960, %v959
    %v966 = vsel %vm216, %v952, 0
    %968 = vmatpush.bf16.msra.mxu0 0
    %969 = vmatpush.bf16.msra.mxu0 0
    %970 = vmatpush.bf16.msra.mxu0 0
    %971 = vmatpush.bf16.msra.mxu0 0
    %972 = vmatpush.bf16.msra.mxu0 0
    %973 = vmatpush.bf16.msra.mxu0 0
    %974 = vmatpush.bf16.msra.mxu0 %v962
    %975 = vmatpush.bf16.msra.mxu0 %v961
    %976 = vmatmul.bf16.gmra.mxu0 %v966
    %v977 = vpop.f32.mrf.mxu0
    %v978 = vadd.f32 0.0, %v977
    %v979 = vpop.f32.mrf.mxu0
    %980 = vdwg.mxu0
    %v985 = vunpack.c.l.b16 %v941
    %v986 = vunpack.c.l.b16 %v942
    %v987 = vunpack.c.l.b16 %v943
    %v988 = vunpack.c.l.b16 %v944
    %v989 = vpack.c.b16 %v986, %v985
    %v990 = vpack.c.b16 %v988, %v987
    %v994 = vsel %vm216, %v940, 0
    %996 = vmatpush.bf16.msra.mxu0 0
    %997 = vmatpush.bf16.msra.mxu0 0
    %998 = vmatpush.bf16.msra.mxu0 0
    %999 = vmatpush.bf16.msra.mxu0 0
    %1000 = vmatpush.bf16.msra.mxu0 0
    %1001 = vmatpush.bf16.msra.mxu0 0
    %1002 = vmatpush.bf16.msra.mxu0 %v990
    %1003 = vmatpush.bf16.msra.mxu0 %v989
    %1004 = vmatmul.bf16.gmra.mxu0 %v994
    %v1005 = vpop.f32.mrf.mxu0
    %v1006 = vadd.f32 %v978, %v1005
    %v1007 = vpop.f32.mrf.mxu0
    %1008 = vdwg.mxu0
    %v1009 = vld [vmem:[%s9 + $0x30] sm:$0xf]
    %v1010 = vld [vmem:[%s9 + $0x34] sm:$0xf]
    %v1011 = vld [vmem:[%s9 + $0x38] sm:$0xf]
    %v1012 = vld [vmem:[%s9 + $0x3c] sm:$0xf]
    %v1013 = vrot.slane %v951, 2
    %v1018 = vunpack.c.l.b16 %v1009
    %v1019 = vunpack.c.l.b16 %v1010
    %v1020 = vunpack.c.l.b16 %v1011
    %v1021 = vunpack.c.l.b16 %v1012
    %v1022 = vpack.c.b16 %v1019, %v1018
    %v1023 = vpack.c.b16 %v1021, %v1020
    %v1027 = vsel %vm216, %v1013, 0
    %1029 = vmatpush.bf16.msra.mxu0 0
    %1030 = vmatpush.bf16.msra.mxu0 0
    %1031 = vmatpush.bf16.msra.mxu0 0
    %1032 = vmatpush.bf16.msra.mxu0 0
    %1033 = vmatpush.bf16.msra.mxu0 0
    %1034 = vmatpush.bf16.msra.mxu0 0
    %1035 = vmatpush.bf16.msra.mxu0 %v1023
    %1036 = vmatpush.bf16.msra.mxu0 %v1022
    %1037 = vmatmul.bf16.gmra.mxu0 %v1027
    %v1038 = vpop.f32.mrf.mxu0
    %v1039 = vadd.f32 0.0, %v1038
    %v1040 = vpop.f32.mrf.mxu0
    %1041 = vdwg.mxu0
    %v1042 = vadd.f32 %v1006, %v1039
    %v1043 = vperm.slane %v669, 2
    %v1044 = vadd.f32 %v1042, %v1043
    %v1045 = vmax.f32 %v1044, 0.0
    %v1046 = vsel %vm233, %v1045, 0.0
    %1047 = vadd.xlane.f32.xlu0 %v1046
    %v1048 = vpop.xlane.xlu0 %1047
    %v1049 = vmul.f32 %v1048, %v389
    %v1050 = vsub.f32 %v1045, %v1049
    %v1051 = vmul.f32 %v1050, %v1050
    %v1052 = vsel %vm233, %v1051, 0.0
    %1053 = vadd.xlane.f32.xlu0 %v1052
    %v1054 = vpop.xlane.xlu0 %1053
    %v1055 = vmul.f32 %v1054, %v389
    %v1056 = vadd.f32 %v1055, 1e-05
    %v1057 = vrsqrt.pop %v1056
    %v1058 = vmul.f32 %v1057, %v1056
    %v1059 = vmul.f32 %v1058, %v1057
    %v1060 = vmul.f32 0.5, %v1059
    %v1061 = vsub.f32 1.5, %v1060
    %v1062 = vmul.f32 %v1057, %v1061
    %vm1063 = vweird.f32 %v1056
    %vm1064 = vweird.f32 %v1057
    %vm1065 = vmor %vm1063, %vm1064
    %v1066 = vsel %vm1065, %v1057, %v1062
    %v1067 = vmul.f32 %v1050, %v1066
    %v1068 = vperm.slane %v669, 3
    %v1069 = vmul.f32 %v1067, %v1068
    %v1070 = vperm.slane %v669, 4
    %v1071 = vadd.f32 %v1069, %v1070
    %v1072 = vpack.c.bf16 %v1071, %v1071
    %v1073 = vld [vmem:[%s9 + $0x40] sm:$0xf]
    %v1074 = vld [vmem:[%s9 + $0x44] sm:$0xf]
    %v1075 = vld [vmem:[%s9 + $0x48] sm:$0xf]
    %v1076 = vld [vmem:[%s9 + $0x4c] sm:$0xf]
    %v1077 = vperm.slane %v669, 5
    %v1082 = vunpack.c.l.b16 %v1073
    %v1083 = vunpack.c.l.b16 %v1074
    %v1084 = vunpack.c.l.b16 %v1075
    %v1085 = vunpack.c.l.b16 %v1076
    %v1086 = vpack.c.b16 %v1083, %v1082
    %v1087 = vpack.c.b16 %v1085, %v1084
    %v1091 = vsel %vm216, %v1072, 0
    %1093 = vmatpush.bf16.msra.mxu0 0
    %1094 = vmatpush.bf16.msra.mxu0 0
    %1095 = vmatpush.bf16.msra.mxu0 0
    %1096 = vmatpush.bf16.msra.mxu0 0
    %1097 = vmatpush.bf16.msra.mxu0 0
    %1098 = vmatpush.bf16.msra.mxu0 0
    %1099 = vmatpush.bf16.msra.mxu0 %v1087
    %1100 = vmatpush.bf16.msra.mxu0 %v1086
    %1101 = vmatmul.bf16.gmra.mxu0 %v1091
    %v1102 = vpop.f32.mrf.mxu0
    %v1103 = vadd.f32 %v1077, %v1102
    %v1104 = vpop.f32.mrf.mxu0
    %1105 = vdwg.mxu0
    %v1106 = vsel %vm233, %v1103, -inf
    %1107 = vmax.xlane.f32.xlu0 %v1106
    %v1108 = vpop.xlane.xlu0 %1107
    %v1109 = vsub.f32 %v1103, %v1108
    %v1110 = vmul.f32 %v1109, 1.442695
    %v1111 = vpow.pop %v1110
    %v1112 = vsel %vm233, %v1111, 0.0
    %1113 = vadd.xlane.f32.xlu0 %v1112
    %v1114 = vpop.xlane.xlu0 %1113
    %v1115 = vrcp.pop %v1114
    %v1116 = vmul.f32 %v1114, %v1115
    %v1117 = vsub.f32 1.0, %v1116
    %v1118 = vmul.f32 %v1115, %v1117
    %v1119 = vadd.f32 %v1115, %v1118
    %vm1120 = vweird.f32 %v1114
    %vm1121 = vweird.f32 %v1115
    %vm1122 = vmor %vm1120, %vm1121
    %v1123 = vsel %vm1122, %v1115, %v1119
    %v1124 = vand.u32 2147483647, %v1114
    %vm1125 = vcmp.eq.f32.partialorder %v1124, 8.507059e+37
    %v1126 = vand.u32 %v1114, 2147483648
    %v1127 = vor.u32 1.1754944e-38, %v1126
    %v1128 = vsel %vm1125, %v1127, %v1123
    %v1129 = vmul.f32 %v1111, %v1128
    %1130 = vst.msk [vmem:[#allocation10] sm:$0x3] %vm233, %v1129
    // Predicated region
    $region66: #{tpu_custom_call.1} parent=1 // pred_check
      _
    $region67: #{tpu_custom_call.1} parent=1 // pred_check_branch
      %1132 = sbr.rel (0) target = $region69
    $region68: #{tpu_custom_call.1} parent=1 // pred_region
      %1134 = vsyncadd [#allocation4], 0
      %s1136 = sshll.u32 [#allocation10], 4
      %s1137 = int_to_ptr.vmem [resolvable:$true] %s1136
      %s1138 = sshll.u32 %s12, 4
      %s1139 = int_to_ptr.hbm [resolvable:$true] %s1138
      %1141 = dma.vmem_to_hbm [thread:$0]  %s1137, 32, %s1139, [#allocation4]
    $region69: #{tpu_custom_call.1} parent=1 // pred_fallthru
      _
    // Predicated region
    $region70: #{tpu_custom_call.1} parent=1 // pred_check
      _
    $region71: #{tpu_custom_call.1} parent=1 // pred_check_branch
      %1143 = sbr.rel (0) target = $region73
    $region72: #{tpu_custom_call.1} parent=1 // pred_region
      %1145 = dma.done [#allocation4], 32
    $region73: #{tpu_custom_call.1} parent=1 // pred_fallthru
      _
    %1146 = vsyncpa [#allocation3], 1
    %1147 = vsyncpa [#allocation6], 1
    %1148 = vsyncpa [#allocation9], 1
    %1149 = vsyncpa [#allocation4], 1

</llo_original>
